<compile_context>
chip_gen: v7x
topology: tpu7x:2x2x1
jax: 0.10.0
libtpu: 0.0.40
codegen_flags: <defaults>
</compile_context>

<pallas_src>
import functools
import math

import jax
import jax.numpy as jnp
from jax import lax
from jax.experimental import pallas as pl
from jax.experimental.pallas import tpu as pltpu

d_k = d_v = 64
d_model = 512
n_heads = 8
_HD = n_heads * d_k  # 512


# ---------------- Pallas kernels ----------------

def _matmul_kernel(x_ref, w_ref, o_ref):
    # x: (tm, K) f32, w: (K, N) bf16 (VMEM-resident) -> o: (tm, N) o_ref.dtype
    o_ref[...] = jnp.dot(
        x_ref[...].astype(jnp.bfloat16), w_ref[...],
        preferred_element_type=jnp.float32).astype(o_ref.dtype)


def _attention_kernel(q_ref, k_ref, v_ref, mask_ref, ctx_ref, attn_ref, *,
                      exp_bf16):
    # q: (1, tq, HD) bf16, k/v: (1, Sk, HD) bf16, mask: (1, tq, Sk) int8
    # ctx out: (1, tq, HD) bf16 (lane-dense); attn out: (1, H, tq, Sk)
    masked = mask_ref[0].astype(jnp.int32) != 0        # (tq, Sk) bool
    neg_inf = jnp.float32(-1e9)
    scale = jnp.bfloat16(1.0 / math.sqrt(d_k))          # 1/8 -> exact in bf16

    # Heads processed in pairs so the per-pair ctx store is 128 lanes wide
    # (unmasked vst) and only two (tq, d_v) partials are ever live.
    for hp in range(n_heads // 2):
        ctx_pair = []
        for h in (2 * hp, 2 * hp + 1):
            qh = q_ref[0, :, h * d_k:(h + 1) * d_k] * scale   # (tq, dk) bf16
            kh = k_ref[0, :, h * d_k:(h + 1) * d_k]           # (Sk, dk) bf16
            vh = v_ref[0, :, h * d_v:(h + 1) * d_v]           # (Sk, dv) bf16

            # contract over d_k without materializing K^T
            s = lax.dot_general(
                qh, kh, dimension_numbers=(((1,), (1,)), ((), ())),
                preferred_element_type=jnp.float32)           # (tq, Sk) f32
            s = jnp.where(masked, neg_inf, s)

            m = jnp.max(s, axis=-1, keepdims=True)
            if exp_bf16:
                # bf16 EUP (v6e / v7x): ~2x exp throughput; reductions in f32.
                e = jnp.exp((s - m).astype(jnp.bfloat16))
                denom = jnp.sum(e.astype(jnp.float32), axis=-1, keepdims=True)
                p = e * pl.reciprocal(denom, approx=True).astype(jnp.bfloat16)
            else:
                e = jnp.exp(s - m)
                denom = jnp.sum(e, axis=-1, keepdims=True)
                p = (e * pl.reciprocal(denom, approx=True)).astype(jnp.bfloat16)

            attn_ref[0, h] = p.astype(attn_ref.dtype)
            ctx_pair.append(
                jnp.dot(p, vh, preferred_element_type=jnp.float32))  # (tq, dv)

        ctx_ref[0, :, 2 * hp * d_v:(2 * hp + 2) * d_v] = (
            jnp.concatenate(ctx_pair, axis=-1).astype(ctx_ref.dtype))


def _out_proj_ln_kernel(ctx_ref, w_ref, res_ref, o_ref):
    # fused: fc projection + residual add + LayerNorm(d_model), gamma=1 beta=0
    y = jnp.dot(ctx_ref[...], w_ref[...],
                preferred_element_type=jnp.float32) + res_ref[...]
    mean = jnp.mean(y, axis=-1, keepdims=True)
    var = jnp.mean((y - mean) * (y - mean), axis=-1, keepdims=True)
    o_ref[...] = (y - mean) * lax.rsqrt(var + jnp.float32(1e-5))


# ---------------- Wrappers ----------------

def _m_tile(M, pref=512, min_steps=2, mult=16):
    """Largest multiple-of-`mult` tile that divides M, is <= pref, and (when
    possible) leaves >= min_steps grid steps (so v7x's two TensorCores both
    get work). Falls back to the full dimension if no such divisor exists."""
    cap = min(pref, M)
    if min_steps > 1 and (M // min_steps) >= mult:
        cap = min(cap, M // min_steps)
    best = 0
    for t in range(mult, cap + 1, mult):
        if M % t == 0:
            best = t
    return best if best > 0 else M


def _use_bf16_exp():
    """bf16 EUP exists on v6e / v7x only; keep f32 exp elsewhere."""
    try:
        kind = jax.devices()[0].device_kind.lower()
    except Exception:  # pragma: no cover - defensive
        return False
    return ("v6" in kind) or ("v7" in kind)


def _linear(x2d, w_bf16, *, tm, out_dtype=jnp.bfloat16):
    """x2d: (M, K) f32, w_bf16: (K, N) bf16 -> (M, N) out_dtype, tiled over M."""
    M, K = x2d.shape
    N = w_bf16.shape[1]
    return pl.pallas_call(
        _matmul_kernel,
        out_shape=jax.ShapeDtypeStruct((M, N), out_dtype),
        grid=(M // tm,),
        in_specs=[
            pl.BlockSpec((tm, K), lambda i: (i, 0)),
            pl.BlockSpec((K, N), lambda i: (0, 0)),   # weight stays resident
        ],
        out_specs=pl.BlockSpec((tm, N), lambda i: (i, 0)),
        compiler_params=pltpu.CompilerParams(
            dimension_semantics=("parallel",)),
    )(x2d, w_bf16)


def multi_head_attention(input_Q, input_K, input_V, attn_mask, params,
                         attn_dtype=jnp.bfloat16):
    """Pallas implementation of MultiHeadAttention.forward.

    input_Q/K/V: [B, S, d_model] float32; attn_mask: [B, Sq, Sk] bool
    (True == masked). Returns (output [B, Sq, d_model] f32,
    attn [B, H, Sq, Sk] attn_dtype).
    """
    B, Sq, _ = input_Q.shape
    Sk = input_K.shape[1]

    # bf16 weights (halves weight DMA traffic; f32 accumulation in-kernel)
    wq = params["W_Q"].T.astype(jnp.bfloat16)
    wk = params["W_K"].T.astype(jnp.bfloat16)
    wv = params["W_V"].T.astype(jnp.bfloat16)
    wo = params["fc"].T.astype(jnp.bfloat16)

    Mq, Mk = B * Sq, B * Sk
    tmq = _m_tile(Mq)
    tmk = _m_tile(Mk)

    xq = input_Q.reshape(Mq, d_model)

    # --- projections: fuse whenever inputs share the same tensor ------------
    if (input_Q is input_K) and (input_K is input_V):
        # self-attention: single (d_model, 3*HD) matmul, activation read once
        qkv = _linear(xq, jnp.concatenate([wq, wk, wv], axis=1), tm=tmq)
        Qa = Ka = Va = qkv.reshape(B, Sq, 3 * _HD)
        q_col, k_col, v_col = 0, 1, 2
    else:
        Qa = _linear(xq, wq, tm=tmq).reshape(B, Sq, _HD)
        q_col = 0
        xk = input_K.reshape(Mk, d_model)
        if input_K is input_V:
            kv = _linear(xk, jnp.concatenate([wk, wv], axis=1), tm=tmk)
            Ka = Va = kv.reshape(B, Sk, 2 * _HD)
            k_col, v_col = 0, 1
        else:
            Ka = _linear(xk, wk, tm=tmk).reshape(B, Sk, _HD)
            Va = _linear(input_V.reshape(Mk, d_model), wv,
                         tm=tmk).reshape(B, Sk, _HD)
            k_col, v_col = 0, 0

    mask_i8 = attn_mask.astype(jnp.int8)

    # --- attention: grid over (batch, q-tiles), heads looped in-kernel ------
    tq = _m_tile(Sq, pref=128, min_steps=1)
    nq = Sq // tq

    # K/V blocks only change with the batch axis, so they are not re-fetched
    # across q-tiles; everything that scales with Sk is bf16 or int8.
    est_bytes = 2 * (tq * _HD * 2            # Q block (bf16, double-buffered)
                     + 2 * Sk * _HD * 2      # K + V blocks (bf16)
                     + tq * Sk               # mask (int8)
                     + tq * _HD * 2          # ctx out (bf16)
                     + n_heads * tq * Sk *
                     jnp.dtype(attn_dtype).itemsize)  # attn out
    vmem_limit = int(min(max(est_bytes * 1.5, 32 * 2**20), 64 * 2**20))

    attn_kernel = functools.partial(_attention_kernel,
                                    exp_bf16=_use_bf16_exp())

    ctx, attn = pl.pallas_call(
        attn_kernel,
        out_shape=(
            jax.ShapeDtypeStruct((B, Sq, _HD), jnp.bfloat16),
            jax.ShapeDtypeStruct((B, n_heads, Sq, Sk), attn_dtype),
        ),
        grid=(B, nq),
        in_specs=[
            pl.BlockSpec((1, tq, _HD), lambda b, i: (b, i, q_col)),
            pl.BlockSpec((1, Sk, _HD), lambda b, i: (b, 0, k_col)),
            pl.BlockSpec((1, Sk, _HD), lambda b, i: (b, 0, v_col)),
            pl.BlockSpec((1, tq, Sk), lambda b, i: (b, i, 0)),
        ],
        out_specs=(
            pl.BlockSpec((1, tq, _HD), lambda b, i: (b, i, 0)),
            pl.BlockSpec((1, n_heads, tq, Sk), lambda b, i: (b, 0, i, 0)),
        ),
        compiler_params=pltpu.CompilerParams(
            dimension_semantics=("parallel", "parallel"),
            vmem_limit_bytes=vmem_limit),
    )(Qa, Ka, Va, mask_i8)

    # --- fused output projection + residual + LayerNorm (tiled over M) ------
    ctx2 = ctx.reshape(Mq, _HD)            # already lane-dense bf16, no transpose
    res2 = input_Q.reshape(Mq, d_model)
    out = pl.pallas_call(
        _out_proj_ln_kernel,
        out_shape=jax.ShapeDtypeStruct((Mq, d_model), jnp.float32),
        grid=(Mq // tmq,),
        in_specs=[
            pl.BlockSpec((tmq, _HD), lambda i: (i, 0)),
            pl.BlockSpec((_HD, d_model), lambda i: (0, 0)),   # resident weight
            pl.BlockSpec((tmq, d_model), lambda i: (i, 0)),
        ],
        out_specs=pl.BlockSpec((tmq, d_model), lambda i: (i, 0)),
        compiler_params=pltpu.CompilerParams(
            dimension_semantics=("parallel",)),
    )(ctx2, wo, res2)

    return out.reshape(B, Sq, d_model), attn


# ---------------- Pure-JAX f32 reference (for validation) ----------------

def _reference(input_Q, input_K, input_V, attn_mask, params):
    B, Sq, _ = input_Q.shape
    Sk = input_K.shape[1]
    Q = (input_Q @ params["W_Q"].T).reshape(B, Sq, n_heads, d_k).transpose(0, 2, 1, 3)
    K = (input_K @ params["W_K"].T).reshape(B, Sk, n_heads, d_k).transpose(0, 2, 1, 3)
    V = (input_V @ params["W_V"].T).reshape(B, Sk, n_heads, d_v).transpose(0, 2, 1, 3)
    scores = jnp.einsum("bhqd,bhkd->bhqk", Q, K) / math.sqrt(d_k)
    scores = jnp.where(attn_mask[:, None, :, :], -1e9, scores)
    attn = jax.nn.softmax(scores, axis=-1)
    ctx = jnp.einsum("bhqk,bhkd->bhqd", attn, V)
    ctx = ctx.transpose(0, 2, 1, 3).reshape(B, Sq, n_heads * d_v)
    out = ctx @ params["fc"].T + input_Q
    mean = out.mean(-1, keepdims=True)
    var = ((out - mean) ** 2).mean(-1, keepdims=True)
    return (out - mean) * lax.rsqrt(var + 1e-5), attn


def _check(iq, ik, iv, mask, params, tag):
    out, attn = multi_head_attention(iq, ik, iv, mask, params)
    out = jax.block_until_ready(out)
    attn = jax.block_until_ready(attn)
    ref_out, ref_attn = _reference(iq, ik, iv, mask, params)
    # matmuls / intermediate tensors are bf16 (f32 accumulation) -> tolerances
    # sized for bf16 mixed precision vs the pure-f32 reference.
    assert jnp.allclose(out, ref_out, atol=5e-2, rtol=5e-2), f"{tag}: output mismatch"
    assert jnp.allclose(attn.astype(jnp.float32), ref_attn,
                        atol=2e-2, rtol=2e-2), f"{tag}: attn mismatch"


if __name__ == "__main__":
    key = jax.random.PRNGKey(0)
    kx, kk, kv, kwq, kwk, kwv, kfc = jax.random.split(key, 7)

    B, S = 2, 8

    x = jax.random.normal(kx, (B, S, d_model), dtype=jnp.float32)
    enc_k = jax.random.normal(kk, (B, S, d_model), dtype=jnp.float32)
    enc_v = jax.random.normal(kv, (B, S, d_model), dtype=jnp.float32)

    # causal attention mask (True == masked)
    attn_mask = jnp.broadcast_to(
        jnp.triu(jnp.ones((S, S), dtype=bool), k=1)[None, :, :], (B, S, S))

    # deterministic parameter init (PyTorch Linear weight shape: [out, in])
    scale = 1.0 / math.sqrt(d_model)
    params = {
        "W_Q": jax.random.uniform(kwq, (n_heads * d_k, d_model), jnp.float32, -scale, scale),
        "W_K": jax.random.uniform(kwk, (n_heads * d_k, d_model), jnp.float32, -scale, scale),
        "W_V": jax.random.uniform(kwv, (n_heads * d_v, d_model), jnp.float32, -scale, scale),
        "fc": jax.random.uniform(kfc, (d_model, n_heads * d_v), jnp.float32, -scale, scale),
    }

    # 1) self-attention: exercises the fused (d_model, 3*HD) QKV projection
    _check(x, x, x, attn_mask, params, "self-attn")
    # 2) cross-attention with shared K/V source: fused (d_model, 2*HD) path
    _check(x, enc_k, enc_k, attn_mask, params, "cross-attn(kv-fused)")
    # 3) fully separate Q/K/V inputs
    _check(x, enc_k, enc_v, attn_mask, params, "cross-attn(separate)")

    print("KERNEL_OK")
</pallas_src>

<mosaic_0001>
module attributes {stable_mosaic.version = 11 : i64} {
  func.func @_matmul_kernel(%arg0: i32, %arg1: memref<16x512xf32, #tpu.memory_space<vmem>>, %arg2: memref<512x1536xbf16, #tpu.memory_space<vmem>>, %arg3: memref<16x1536xbf16, #tpu.memory_space<vmem>>) attributes {dimension_semantics = [#tpu.dimension_semantics<parallel>], iteration_bounds = array<i64: 1>, scalar_prefetch = 0 : i64, scratch_operands = 0 : i64, tpu.core_type = #tpu.core_type<tc>, window_params = [{transform_indices = @transform_0, window_bounds = array<i64: 16, 512>}, {pipeline_mode = #tpu.pipeline_mode<synchronous>, transform_indices = @transform_1, window_bounds = array<i64: 512, 1536>}, {transform_indices = @transform_2, window_bounds = array<i64: 16, 1536>}]} {
    %c0 = arith.constant 0 : index
    %c0_0 = arith.constant 0 : index
    %0 = vector.load %arg1[%c0, %c0_0] : memref<16x512xf32, #tpu.memory_space<vmem>>, vector<16x512xf32>
    %1 = arith.truncf %0 : vector<16x512xf32> to vector<16x512xbf16>
    %c0_1 = arith.constant 0 : index
    %c0_2 = arith.constant 0 : index
    %2 = vector.load %arg2[%c0_1, %c0_2] : memref<512x1536xbf16, #tpu.memory_space<vmem>>, vector<512x1536xbf16>
    %cst = arith.constant dense<0.000000e+00> : vector<16x1536xf32>
    %3 = tpu.matmul %1, %2, %cst {dimension_numbers = #tpu.dot_dimension_numbers<[1], [0], [0], [1], [0, 0, 1, 1], [], []>} : vector<16x512xbf16>, vector<512x1536xbf16>, vector<16x1536xf32> -> vector<16x1536xf32>
    %4 = arith.truncf %3 : vector<16x1536xf32> to vector<16x1536xbf16>
    %c0_3 = arith.constant 0 : index
    %c0_4 = arith.constant 0 : index
    %5 = vector.load %arg3[%c0_3, %c0_4] : memref<16x1536xbf16, #tpu.memory_space<vmem>>, vector<16x1536xbf16>
    tpu.vector_store %arg3[%c0_3, %c0_4], %4 {strides = array<i32>} : memref<16x1536xbf16, #tpu.memory_space<vmem>>, vector<16x1536xbf16>,
    return
  }
  func.func @transform_0(%arg0: i32) -> (i32, i32) {
    %c0_i32 = arith.constant 0 : i32
    %c0_i32_0 = arith.constant 0 : i32
    return %arg0, %c0_i32 : i32, i32
  }
  func.func @transform_1(%arg0: i32) -> (i32, i32) {
    %c0_i32 = arith.constant 0 : i32
    %c0_i32_0 = arith.constant 0 : i32
    %c0_i32_1 = arith.constant 0 : i32
    return %c0_i32, %c0_i32_0 : i32, i32
  }
  func.func @transform_2(%arg0: i32) -> (i32, i32) {
    %c0_i32 = arith.constant 0 : i32
    %c0_i32_0 = arith.constant 0 : i32
    return %arg0, %c0_i32 : i32, i32
  }
}

</mosaic_0001>

<llo_original>
// kernel: tpu_custom_call.1
$region0: #{tpu_custom_call.1}
  #allocation0 [shape = 'u32[]', space=smem, size = 0x4, offset = 0x4, fixed_abs, tag = 'smem constant byte address 0x4 - core index']
  #allocation1 [shape = 'u32[144,128]{1,0:T(1,128)}', space=vmem, size = 0x12000, scoped, tag = 'internal scratch']
  %s0 = inlined_call_operand.hbm [shape: f32[16,512], index: 0, kind: input, shape index: {}]
  %s1 = inlined_call_operand.hbm [shape: bf16[512,1536], index: 1, kind: input, shape index: {}]
  %s2 = inlined_call_operand.hbm [shape: bf16[16,1536], index: 2, kind: output, shape index: {}]
  %s3 = sld [smem:[#allocation0]]
  $region26: #{tpu_custom_call.1} parent=0
    _
  %s5 = ssub.s32 1, %s3
  %s6 = scalar_select 0, %s5, %s3
  $region1: #{tpu_custom_call.1} parent=0
    #allocation2 [shape = 'u8[32768]{0}', space=vmem, size = 0x8000, scoped, tag = 'input window, operand 0, single buffered']
    #allocation3 [shape = 's32[1]{0}', space=sflag, size = 0x4, scoped, tag = 'scoped memory for tpu_custom_call.1']
    #allocation4 [shape = 's32[1]{0}', space=sflag, size = 0x4, scoped, tag = 'scoped memory for tpu_custom_call.1']
    #allocation5 [shape = 'u8[1572864]{0}', space=vmem, size = 0x180000, scoped, tag = 'input window, operand 1, single buffered']
    #allocation6 [shape = 's32[1]{0}', space=sflag, size = 0x4, scoped, tag = 'scoped memory for tpu_custom_call.1']
    #allocation7 [shape = 'u8[49152]{0}', space=vmem, size = 0xc000, scoped, tag = 'output window, operand 0, single buffered']
    %7 = vsyncpa [#allocation3], 0
    %8 = vsyncpa [#allocation6], 0
    %9 = vsyncpa [#allocation4], 0
    // Predicated region
    $region2: #{tpu_custom_call.1} parent=1 // pred_check
      _
    $region3: #{tpu_custom_call.1} parent=1 // pred_check_branch
      %11 = sbr.rel (0) target = $region5
    $region4: #{tpu_custom_call.1} parent=1 // pred_region
      %s13 = ssub.s32 1024, 1024
      %14 = vsyncadd [#allocation3], %s13
      %s15 = sshll.u32 [#allocation2], 4
      %s16 = int_to_ptr.vmem [resolvable:$true] %s15
      %21 = dma.hbm_to_vmem [thread:$0]  %s0, 1024, %s16, [#allocation3], 512, 512, 32
    $region5: #{tpu_custom_call.1} parent=1 // pred_fallthru
      _
    // Predicated region
    $region6: #{tpu_custom_call.1} parent=1 // pred_check
      _
    $region7: #{tpu_custom_call.1} parent=1 // pred_check_branch
      %23 = sbr.rel (0) target = $region9
    $region8: #{tpu_custom_call.1} parent=1 // pred_region
      %s25 = ssub.s32 49152, 49152
      %26 = vsyncadd [#allocation6], %s25
      %s27 = sshll.u32 [#allocation5], 4
      %s28 = int_to_ptr.vmem [resolvable:$true] %s27
      %33 = dma.hbm_to_vmem [thread:$0]  %s1, 49152, %s28, [#allocation6], 768, 768, 48
    $region9: #{tpu_custom_call.1} parent=1 // pred_fallthru
      _
    // Predicated region
    $region10: #{tpu_custom_call.1} parent=1 // pred_check
      _
    $region11: #{tpu_custom_call.1} parent=1 // pred_check_branch
      %35 = sbr.rel (0) target = $region13
    $region12: #{tpu_custom_call.1} parent=1 // pred_region
      %36 = dma.done [#allocation3], 1024
    $region13: #{tpu_custom_call.1} parent=1 // pred_fallthru
      _
    // Predicated region
    $region14: #{tpu_custom_call.1} parent=1 // pred_check
      _
    $region15: #{tpu_custom_call.1} parent=1 // pred_check_branch
      %38 = sbr.rel (0) target = $region17
    $region16: #{tpu_custom_call.1} parent=1 // pred_region
      %39 = dma.done [#allocation6], 49152
    $region17: #{tpu_custom_call.1} parent=1 // pred_fallthru
      _
    %v40 = vld [vmem:[#allocation2] sm:$0xff]
    %v41 = vld [vmem:[#allocation2 + $0x8] sm:$0xff]
    %v42 = vld [vmem:[#allocation2 + $0x10] sm:$0xff]
    %v43 = vld [vmem:[#allocation2 + $0x18] sm:$0xff]
    %v44 = vld [vmem:[#allocation2 + $0x20] sm:$0xff]
    %v45 = vld [vmem:[#allocation2 + $0x28] sm:$0xff]
    %v46 = vld [vmem:[#allocation2 + $0x30] sm:$0xff]
    %v47 = vld [vmem:[#allocation2 + $0x38] sm:$0xff]
    %v48 = vpack.c.bf16 %v44, %v40
    %v49 = vpack.c.bf16 %v45, %v41
    %v50 = vpack.c.bf16 %v46, %v42
    %v51 = vpack.c.bf16 %v47, %v43
    %v52 = vld [vmem:[#allocation5] sm:$0xff]
    %v53 = vld [vmem:[#allocation5 + $0x8] sm:$0xff]
    %v54 = vld [vmem:[#allocation5 + $0x10] sm:$0xff]
    %v55 = vld [vmem:[#allocation5 + $0x18] sm:$0xff]
    %v56 = vld [vmem:[#allocation5 + $0x20] sm:$0xff]
    %v57 = vld [vmem:[#allocation5 + $0x28] sm:$0xff]
    %v58 = vld [vmem:[#allocation5 + $0x30] sm:$0xff]
    %v59 = vld [vmem:[#allocation5 + $0x38] sm:$0xff]
    %v60 = vld [vmem:[#allocation5 + $0x40] sm:$0xff]
    %v61 = vld [vmem:[#allocation5 + $0x48] sm:$0xff]
    %v62 = vld [vmem:[#allocation5 + $0x50] sm:$0xff]
    %v63 = vld [vmem:[#allocation5 + $0x58] sm:$0xff]
    %v64 = vld [vmem:[#allocation5 + $0x60] sm:$0xff]
    %v65 = vld [vmem:[#allocation5 + $0x68] sm:$0xff]
    %v66 = vld [vmem:[#allocation5 + $0x70] sm:$0xff]
    %v67 = vld [vmem:[#allocation5 + $0x78] sm:$0xff]
    %v68 = vld [vmem:[#allocation5 + $0x80] sm:$0xff]
    %v69 = vld [vmem:[#allocation5 + $0x88] sm:$0xff]
    %v70 = vld [vmem:[#allocation5 + $0x90] sm:$0xff]
    %v71 = vld [vmem:[#allocation5 + $0x98] sm:$0xff]
    %v72 = vld [vmem:[#allocation5 + $0xa0] sm:$0xff]
    %v73 = vld [vmem:[#allocation5 + $0xa8] sm:$0xff]
    %v74 = vld [vmem:[#allocation5 + $0xb0] sm:$0xff]
    %v75 = vld [vmem:[#allocation5 + $0xb8] sm:$0xff]
    %v76 = vld [vmem:[#allocation5 + $0xc0] sm:$0xff]
    %v77 = vld [vmem:[#allocation5 + $0xc8] sm:$0xff]
    %v78 = vld [vmem:[#allocation5 + $0xd0] sm:$0xff]
    %v79 = vld [vmem:[#allocation5 + $0xd8] sm:$0xff]
    %v80 = vld [vmem:[#allocation5 + $0xe0] sm:$0xff]
    %v81 = vld [vmem:[#allocation5 + $0xe8] sm:$0xff]
    %v82 = vld [vmem:[#allocation5 + $0xf0] sm:$0xff]
    %v83 = vld [vmem:[#allocation5 + $0xf8] sm:$0xff]
    %v84 = vld [vmem:[#allocation5 + $0x100] sm:$0xff]
    %v85 = vld [vmem:[#allocation5 + $0x108] sm:$0xff]
    %v86 = vld [vmem:[#allocation5 + $0x110] sm:$0xff]
    %v87 = vld [vmem:[#allocation5 + $0x118] sm:$0xff]
    %v88 = vld [vmem:[#allocation5 + $0x120] sm:$0xff]
    %v89 = vld [vmem:[#allocation5 + $0x128] sm:$0xff]
    %v90 = vld [vmem:[#allocation5 + $0x130] sm:$0xff]
    %v91 = vld [vmem:[#allocation5 + $0x138] sm:$0xff]
    %v92 = vld [vmem:[#allocation5 + $0x140] sm:$0xff]
    %v93 = vld [vmem:[#allocation5 + $0x148] sm:$0xff]
    %v94 = vld [vmem:[#allocation5 + $0x150] sm:$0xff]
    %v95 = vld [vmem:[#allocation5 + $0x158] sm:$0xff]
    %v96 = vld [vmem:[#allocation5 + $0x160] sm:$0xff]
    %v97 = vld [vmem:[#allocation5 + $0x168] sm:$0xff]
    %v98 = vld [vmem:[#allocation5 + $0x170] sm:$0xff]
    %v99 = vld [vmem:[#allocation5 + $0x178] sm:$0xff]
    %v100 = vld [vmem:[#allocation5 + $0x180] sm:$0xff]
    %v101 = vld [vmem:[#allocation5 + $0x188] sm:$0xff]
    %v102 = vld [vmem:[#allocation5 + $0x190] sm:$0xff]
    %v103 = vld [vmem:[#allocation5 + $0x198] sm:$0xff]
    %v104 = vld [vmem:[#allocation5 + $0x1a0] sm:$0xff]
    %v105 = vld [vmem:[#allocation5 + $0x1a8] sm:$0xff]
    %v106 = vld [vmem:[#allocation5 + $0x1b0] sm:$0xff]
    %v107 = vld [vmem:[#allocation5 + $0x1b8] sm:$0xff]
    %v108 = vld [vmem:[#allocation5 + $0x1c0] sm:$0xff]
    %v109 = vld [vmem:[#allocation5 + $0x1c8] sm:$0xff]
    %v110 = vld [vmem:[#allocation5 + $0x1d0] sm:$0xff]
    %v111 = vld [vmem:[#allocation5 + $0x1d8] sm:$0xff]
    %v112 = vld [vmem:[#allocation5 + $0x1e0] sm:$0xff]
    %v113 = vld [vmem:[#allocation5 + $0x1e8] sm:$0xff]
    %v114 = vld [vmem:[#allocation5 + $0x1f0] sm:$0xff]
    %v115 = vld [vmem:[#allocation5 + $0x1f8] sm:$0xff]
    %v116 = vld [vmem:[#allocation5 + $0x200] sm:$0xff]
    %v117 = vld [vmem:[#allocation5 + $0x208] sm:$0xff]
    %v118 = vld [vmem:[#allocation5 + $0x210] sm:$0xff]
    %v119 = vld [vmem:[#allocation5 + $0x218] sm:$0xff]
    %v120 = vld [vmem:[#allocation5 + $0x220] sm:$0xff]
    %v121 = vld [vmem:[#allocation5 + $0x228] sm:$0xff]
    %v122 = vld [vmem:[#allocation5 + $0x230] sm:$0xff]
    %v123 = vld [vmem:[#allocation5 + $0x238] sm:$0xff]
    %v124 = vld [vmem:[#allocation5 + $0x240] sm:$0xff]
    %v125 = vld [vmem:[#allocation5 + $0x248] sm:$0xff]
    %v126 = vld [vmem:[#allocation5 + $0x250] sm:$0xff]
    %v127 = vld [vmem:[#allocation5 + $0x258] sm:$0xff]
    %v128 = vld [vmem:[#allocation5 + $0x260] sm:$0xff]
    %v129 = vld [vmem:[#allocation5 + $0x268] sm:$0xff]
    %v130 = vld [vmem:[#allocation5 + $0x270] sm:$0xff]
    %v131 = vld [vmem:[#allocation5 + $0x278] sm:$0xff]
    %v132 = vld [vmem:[#allocation5 + $0x280] sm:$0xff]
    %v133 = vld [vmem:[#allocation5 + $0x288] sm:$0xff]
    %v134 = vld [vmem:[#allocation5 + $0x290] sm:$0xff]
    %v135 = vld [vmem:[#allocation5 + $0x298] sm:$0xff]
    %v136 = vld [vmem:[#allocation5 + $0x2a0] sm:$0xff]
    %v137 = vld [vmem:[#allocation5 + $0x2a8] sm:$0xff]
    %v138 = vld [vmem:[#allocation5 + $0x2b0] sm:$0xff]
    %v139 = vld [vmem:[#allocation5 + $0x2b8] sm:$0xff]
    %v140 = vld [vmem:[#allocation5 + $0x2c0] sm:$0xff]
    %v141 = vld [vmem:[#allocation5 + $0x2c8] sm:$0xff]
    %v142 = vld [vmem:[#allocation5 + $0x2d0] sm:$0xff]
    %v143 = vld [vmem:[#allocation5 + $0x2d8] sm:$0xff]
    %v144 = vld [vmem:[#allocation5 + $0x2e0] sm:$0xff]
    %v145 = vld [vmem:[#allocation5 + $0x2e8] sm:$0xff]
    %v146 = vld [vmem:[#allocation5 + $0x2f0] sm:$0xff]
    %v147 = vld [vmem:[#allocation5 + $0x2f8] sm:$0xff]
    %v148 = vld [vmem:[#allocation5 + $0x300] sm:$0xff]
    %v149 = vld [vmem:[#allocation5 + $0x308] sm:$0xff]
    %v150 = vld [vmem:[#allocation5 + $0x310] sm:$0xff]
    %v151 = vld [vmem:[#allocation5 + $0x318] sm:$0xff]
    %v152 = vld [vmem:[#allocation5 + $0x320] sm:$0xff]
    %v153 = vld [vmem:[#allocation5 + $0x328] sm:$0xff]
    %v154 = vld [vmem:[#allocation5 + $0x330] sm:$0xff]
    %v155 = vld [vmem:[#allocation5 + $0x338] sm:$0xff]
    %v156 = vld [vmem:[#allocation5 + $0x340] sm:$0xff]
    %v157 = vld [vmem:[#allocation5 + $0x348] sm:$0xff]
    %v158 = vld [vmem:[#allocation5 + $0x350] sm:$0xff]
    %v159 = vld [vmem:[#allocation5 + $0x358] sm:$0xff]
    %v160 = vld [vmem:[#allocation5 + $0x360] sm:$0xff]
    %v161 = vld [vmem:[#allocation5 + $0x368] sm:$0xff]
    %v162 = vld [vmem:[#allocation5 + $0x370] sm:$0xff]
    %v163 = vld [vmem:[#allocation5 + $0x378] sm:$0xff]
    %v164 = vld [vmem:[#allocation5 + $0x380] sm:$0xff]
    %v165 = vld [vmem:[#allocation5 + $0x388] sm:$0xff]
    %v166 = vld [vmem:[#allocation5 + $0x390] sm:$0xff]
    %v167 = vld [vmem:[#allocation5 + $0x398] sm:$0xff]
    %v168 = vld [vmem:[#allocation5 + $0x3a0] sm:$0xff]
    %v169 = vld [vmem:[#allocation5 + $0x3a8] sm:$0xff]
    %v170 = vld [vmem:[#allocation5 + $0x3b0] sm:$0xff]
    %v171 = vld [vmem:[#allocation5 + $0x3b8] sm:$0xff]
    %v172 = vld [vmem:[#allocation5 + $0x3c0] sm:$0xff]
    %v173 = vld [vmem:[#allocation5 + $0x3c8] sm:$0xff]
    %v174 = vld [vmem:[#allocation5 + $0x3d0] sm:$0xff]
    %v175 = vld [vmem:[#allocation5 + $0x3d8] sm:$0xff]
    %v176 = vld [vmem:[#allocation5 + $0x3e0] sm:$0xff]
    %v177 = vld [vmem:[#allocation5 + $0x3e8] sm:$0xff]
    %v178 = vld [vmem:[#allocation5 + $0x3f0] sm:$0xff]
    %v179 = vld [vmem:[#allocation5 + $0x3f8] sm:$0xff]
    %v180 = vld [vmem:[#allocation5 + $0x400] sm:$0xff]
    %v181 = vld [vmem:[#allocation5 + $0x408] sm:$0xff]
    %v182 = vld [vmem:[#allocation5 + $0x410] sm:$0xff]
    %v183 = vld [vmem:[#allocation5 + $0x418] sm:$0xff]
    %v184 = vld [vmem:[#allocation5 + $0x420] sm:$0xff]
    %v185 = vld [vmem:[#allocation5 + $0x428] sm:$0xff]
    %v186 = vld [vmem:[#allocation5 + $0x430] sm:$0xff]
    %v187 = vld [vmem:[#allocation5 + $0x438] sm:$0xff]
    %v188 = vld [vmem:[#allocation5 + $0x440] sm:$0xff]
    %v189 = vld [vmem:[#allocation5 + $0x448] sm:$0xff]
    %v190 = vld [vmem:[#allocation5 + $0x450] sm:$0xff]
    %v191 = vld [vmem:[#allocation5 + $0x458] sm:$0xff]
    %v192 = vld [vmem:[#allocation5 + $0x460] sm:$0xff]
    %v193 = vld [vmem:[#allocation5 + $0x468] sm:$0xff]
    %v194 = vld [vmem:[#allocation5 + $0x470] sm:$0xff]
    %v195 = vld [vmem:[#allocation5 + $0x478] sm:$0xff]
    %v196 = vld [vmem:[#allocation5 + $0x480] sm:$0xff]
    %v197 = vld [vmem:[#allocation5 + $0x488] sm:$0xff]
    %v198 = vld [vmem:[#allocation5 + $0x490] sm:$0xff]
    %v199 = vld [vmem:[#allocation5 + $0x498] sm:$0xff]
    %v200 = vld [vmem:[#allocation5 + $0x4a0] sm:$0xff]
    %v201 = vld [vmem:[#allocation5 + $0x4a8] sm:$0xff]
    %v202 = vld [vmem:[#allocation5 + $0x4b0] sm:$0xff]
    %v203 = vld [vmem:[#allocation5 + $0x4b8] sm:$0xff]
    %v204 = vld [vmem:[#allocation5 + $0x4c0] sm:$0xff]
    %v205 = vld [vmem:[#allocation5 + $0x4c8] sm:$0xff]
    %v206 = vld [vmem:[#allocation5 + $0x4d0] sm:$0xff]
    %v207 = vld [vmem:[#allocation5 + $0x4d8] sm:$0xff]
    %v208 = vld [vmem:[#allocation5 + $0x4e0] sm:$0xff]
    %v209 = vld [vmem:[#allocation5 + $0x4e8] sm:$0xff]
    %v210 = vld [vmem:[#allocation5 + $0x4f0] sm:$0xff]
    %v211 = vld [vmem:[#allocation5 + $0x4f8] sm:$0xff]
    %v212 = vld [vmem:[#allocation5 + $0x500] sm:$0xff]
    %v213 = vld [vmem:[#allocation5 + $0x508] sm:$0xff]
    %v214 = vld [vmem:[#allocation5 + $0x510] sm:$0xff]
    %v215 = vld [vmem:[#allocation5 + $0x518] sm:$0xff]
    %v216 = vld [vmem:[#allocation5 + $0x520] sm:$0xff]
    %v217 = vld [vmem:[#allocation5 + $0x528] sm:$0xff]
    %v218 = vld [vmem:[#allocation5 + $0x530] sm:$0xff]
    %v219 = vld [vmem:[#allocation5 + $0x538] sm:$0xff]
    %v220 = vld [vmem:[#allocation5 + $0x540] sm:$0xff]
    %v221 = vld [vmem:[#allocation5 + $0x548] sm:$0xff]
    %v222 = vld [vmem:[#allocation5 + $0x550] sm:$0xff]
    %v223 = vld [vmem:[#allocation5 + $0x558] sm:$0xff]
    %v224 = vld [vmem:[#allocation5 + $0x560] sm:$0xff]
    %v225 = vld [vmem:[#allocation5 + $0x568] sm:$0xff]
    %v226 = vld [vmem:[#allocation5 + $0x570] sm:$0xff]
    %v227 = vld [vmem:[#allocation5 + $0x578] sm:$0xff]
    %v228 = vld [vmem:[#allocation5 + $0x580] sm:$0xff]
    %v229 = vld [vmem:[#allocation5 + $0x588] sm:$0xff]
    %v230 = vld [vmem:[#allocation5 + $0x590] sm:$0xff]
    %v231 = vld [vmem:[#allocation5 + $0x598] sm:$0xff]
    %v232 = vld [vmem:[#allocation5 + $0x5a0] sm:$0xff]
    %v233 = vld [vmem:[#allocation5 + $0x5a8] sm:$0xff]
    %v234 = vld [vmem:[#allocation5 + $0x5b0] sm:$0xff]
    %v235 = vld [vmem:[#allocation5 + $0x5b8] sm:$0xff]
    %v236 = vld [vmem:[#allocation5 + $0x5c0] sm:$0xff]
    %v237 = vld [vmem:[#allocation5 + $0x5c8] sm:$0xff]
    %v238 = vld [vmem:[#allocation5 + $0x5d0] sm:$0xff]
    %v239 = vld [vmem:[#allocation5 + $0x5d8] sm:$0xff]
    %v240 = vld [vmem:[#allocation5 + $0x5e0] sm:$0xff]
    %v241 = vld [vmem:[#allocation5 + $0x5e8] sm:$0xff]
    %v242 = vld [vmem:[#allocation5 + $0x5f0] sm:$0xff]
    %v243 = vld [vmem:[#allocation5 + $0x5f8] sm:$0xff]
    %v244 = vld [vmem:[#allocation5 + $0x600] sm:$0xff]
    %v245 = vld [vmem:[#allocation5 + $0x608] sm:$0xff]
    %v246 = vld [vmem:[#allocation5 + $0x610] sm:$0xff]
    %v247 = vld [vmem:[#allocation5 + $0x618] sm:$0xff]
    %v248 = vld [vmem:[#allocation5 + $0x620] sm:$0xff]
    %v249 = vld [vmem:[#allocation5 + $0x628] sm:$0xff]
    %v250 = vld [vmem:[#allocation5 + $0x630] sm:$0xff]
    %v251 = vld [vmem:[#allocation5 + $0x638] sm:$0xff]
    %v252 = vld [vmem:[#allocation5 + $0x640] sm:$0xff]
    %v253 = vld [vmem:[#allocation5 + $0x648] sm:$0xff]
    %v254 = vld [vmem:[#allocation5 + $0x650] sm:$0xff]
    %v255 = vld [vmem:[#allocation5 + $0x658] sm:$0xff]
    %v256 = vld [vmem:[#allocation5 + $0x660] sm:$0xff]
    %v257 = vld [vmem:[#allocation5 + $0x668] sm:$0xff]
    %v258 = vld [vmem:[#allocation5 + $0x670] sm:$0xff]
    %v259 = vld [vmem:[#allocation5 + $0x678] sm:$0xff]
    %v260 = vld [vmem:[#allocation5 + $0x680] sm:$0xff]
    %v261 = vld [vmem:[#allocation5 + $0x688] sm:$0xff]
    %v262 = vld [vmem:[#allocation5 + $0x690] sm:$0xff]
    %v263 = vld [vmem:[#allocation5 + $0x698] sm:$0xff]
    %v264 = vld [vmem:[#allocation5 + $0x6a0] sm:$0xff]
    %v265 = vld [vmem:[#allocation5 + $0x6a8] sm:$0xff]
    %v266 = vld [vmem:[#allocation5 + $0x6b0] sm:$0xff]
    %v267 = vld [vmem:[#allocation5 + $0x6b8] sm:$0xff]
    %v268 = vld [vmem:[#allocation5 + $0x6c0] sm:$0xff]
    %v269 = vld [vmem:[#allocation5 + $0x6c8] sm:$0xff]
    %v270 = vld [vmem:[#allocation5 + $0x6d0] sm:$0xff]
    %v271 = vld [vmem:[#allocation5 + $0x6d8] sm:$0xff]
    %v272 = vld [vmem:[#allocation5 + $0x6e0] sm:$0xff]
    %v273 = vld [vmem:[#allocation5 + $0x6e8] sm:$0xff]
    %v274 = vld [vmem:[#allocation5 + $0x6f0] sm:$0xff]
    %v275 = vld [vmem:[#allocation5 + $0x6f8] sm:$0xff]
    %v276 = vld [vmem:[#allocation5 + $0x700] sm:$0xff]
    %v277 = vld [vmem:[#allocation5 + $0x708] sm:$0xff]
    %v278 = vld [vmem:[#allocation5 + $0x710] sm:$0xff]
    %v279 = vld [vmem:[#allocation5 + $0x718] sm:$0xff]
    %v280 = vld [vmem:[#allocation5 + $0x720] sm:$0xff]
    %v281 = vld [vmem:[#allocation5 + $0x728] sm:$0xff]
    %v282 = vld [vmem:[#allocation5 + $0x730] sm:$0xff]
    %v283 = vld [vmem:[#allocation5 + $0x738] sm:$0xff]
    %v284 = vld [vmem:[#allocation5 + $0x740] sm:$0xff]
    %v285 = vld [vmem:[#allocation5 + $0x748] sm:$0xff]
    %v286 = vld [vmem:[#allocation5 + $0x750] sm:$0xff]
    %v287 = vld [vmem:[#allocation5 + $0x758] sm:$0xff]
    %v288 = vld [vmem:[#allocation5 + $0x760] sm:$0xff]
    %v289 = vld [vmem:[#allocation5 + $0x768] sm:$0xff]
    %v290 = vld [vmem:[#allocation5 + $0x770] sm:$0xff]
    %v291 = vld [vmem:[#allocation5 + $0x778] sm:$0xff]
    %v292 = vld [vmem:[#allocation5 + $0x780] sm:$0xff]
    %v293 = vld [vmem:[#allocation5 + $0x788] sm:$0xff]
    %v294 = vld [vmem:[#allocation5 + $0x790] sm:$0xff]
    %v295 = vld [vmem:[#allocation5 + $0x798] sm:$0xff]
    %v296 = vld [vmem:[#allocation5 + $0x7a0] sm:$0xff]
    %v297 = vld [vmem:[#allocation5 + $0x7a8] sm:$0xff]
    %v298 = vld [vmem:[#allocation5 + $0x7b0] sm:$0xff]
    %v299 = vld [vmem:[#allocation5 + $0x7b8] sm:$0xff]
    %v300 = vld [vmem:[#allocation5 + $0x7c0] sm:$0xff]
    %v301 = vld [vmem:[#allocation5 + $0x7c8] sm:$0xff]
    %v302 = vld [vmem:[#allocation5 + $0x7d0] sm:$0xff]
    %v303 = vld [vmem:[#allocation5 + $0x7d8] sm:$0xff]
    %v304 = vld [vmem:[#allocation5 + $0x7e0] sm:$0xff]
    %v305 = vld [vmem:[#allocation5 + $0x7e8] sm:$0xff]
    %v306 = vld [vmem:[#allocation5 + $0x7f0] sm:$0xff]
    %v307 = vld [vmem:[#allocation5 + $0x7f8] sm:$0xff]
    %v308 = vld [vmem:[#allocation5 + $0x800] sm:$0xff]
    %v309 = vld [vmem:[#allocation5 + $0x808] sm:$0xff]
    %v310 = vld [vmem:[#allocation5 + $0x810] sm:$0xff]
    %v311 = vld [vmem:[#allocation5 + $0x818] sm:$0xff]
    %v312 = vld [vmem:[#allocation5 + $0x820] sm:$0xff]
    %v313 = vld [vmem:[#allocation5 + $0x828] sm:$0xff]
    %v314 = vld [vmem:[#allocation5 + $0x830] sm:$0xff]
    %v315 = vld [vmem:[#allocation5 + $0x838] sm:$0xff]
    %v316 = vld [vmem:[#allocation5 + $0x840] sm:$0xff]
    %v317 = vld [vmem:[#allocation5 + $0x848] sm:$0xff]
    %v318 = vld [vmem:[#allocation5 + $0x850] sm:$0xff]
    %v319 = vld [vmem:[#allocation5 + $0x858] sm:$0xff]
    %v320 = vld [vmem:[#allocation5 + $0x860] sm:$0xff]
    %v321 = vld [vmem:[#allocation5 + $0x868] sm:$0xff]
    %v322 = vld [vmem:[#allocation5 + $0x870] sm:$0xff]
    %v323 = vld [vmem:[#allocation5 + $0x878] sm:$0xff]
    %v324 = vld [vmem:[#allocation5 + $0x880] sm:$0xff]
    %v325 = vld [vmem:[#allocation5 + $0x888] sm:$0xff]
    %v326 = vld [vmem:[#allocation5 + $0x890] sm:$0xff]
    %v327 = vld [vmem:[#allocation5 + $0x898] sm:$0xff]
    %v328 = vld [vmem:[#allocation5 + $0x8a0] sm:$0xff]
    %v329 = vld [vmem:[#allocation5 + $0x8a8] sm:$0xff]
    %v330 = vld [vmem:[#allocation5 + $0x8b0] sm:$0xff]
    %v331 = vld [vmem:[#allocation5 + $0x8b8] sm:$0xff]
    %v332 = vld [vmem:[#allocation5 + $0x8c0] sm:$0xff]
    %v333 = vld [vmem:[#allocation5 + $0x8c8] sm:$0xff]
    %v334 = vld [vmem:[#allocation5 + $0x8d0] sm:$0xff]
    %v335 = vld [vmem:[#allocation5 + $0x8d8] sm:$0xff]
    %v336 = vld [vmem:[#allocation5 + $0x8e0] sm:$0xff]
    %v337 = vld [vmem:[#allocation5 + $0x8e8] sm:$0xff]
    %v338 = vld [vmem:[#allocation5 + $0x8f0] sm:$0xff]
    %v339 = vld [vmem:[#allocation5 + $0x8f8] sm:$0xff]
    %v340 = vld [vmem:[#allocation5 + $0x900] sm:$0xff]
    %v341 = vld [vmem:[#allocation5 + $0x908] sm:$0xff]
    %v342 = vld [vmem:[#allocation5 + $0x910] sm:$0xff]
    %v343 = vld [vmem:[#allocation5 + $0x918] sm:$0xff]
    %v344 = vld [vmem:[#allocation5 + $0x920] sm:$0xff]
    %v345 = vld [vmem:[#allocation5 + $0x928] sm:$0xff]
    %v346 = vld [vmem:[#allocation5 + $0x930] sm:$0xff]
    %v347 = vld [vmem:[#allocation5 + $0x938] sm:$0xff]
    %v348 = vld [vmem:[#allocation5 + $0x940] sm:$0xff]
    %v349 = vld [vmem:[#allocation5 + $0x948] sm:$0xff]
    %v350 = vld [vmem:[#allocation5 + $0x950] sm:$0xff]
    %v351 = vld [vmem:[#allocation5 + $0x958] sm:$0xff]
    %v352 = vld [vmem:[#allocation5 + $0x960] sm:$0xff]
    %v353 = vld [vmem:[#allocation5 + $0x968] sm:$0xff]
    %v354 = vld [vmem:[#allocation5 + $0x970] sm:$0xff]
    %v355 = vld [vmem:[#allocation5 + $0x978] sm:$0xff]
    %v356 = vld [vmem:[#allocation5 + $0x980] sm:$0xff]
    %v357 = vld [vmem:[#allocation5 + $0x988] sm:$0xff]
    %v358 = vld [vmem:[#allocation5 + $0x990] sm:$0xff]
    %v359 = vld [vmem:[#allocation5 + $0x998] sm:$0xff]
    %v360 = vld [vmem:[#allocation5 + $0x9a0] sm:$0xff]
    %v361 = vld [vmem:[#allocation5 + $0x9a8] sm:$0xff]
    %v362 = vld [vmem:[#allocation5 + $0x9b0] sm:$0xff]
    %v363 = vld [vmem:[#allocation5 + $0x9b8] sm:$0xff]
    %v364 = vld [vmem:[#allocation5 + $0x9c0] sm:$0xff]
    %v365 = vld [vmem:[#allocation5 + $0x9c8] sm:$0xff]
    %v366 = vld [vmem:[#allocation5 + $0x9d0] sm:$0xff]
    %v367 = vld [vmem:[#allocation5 + $0x9d8] sm:$0xff]
    %v368 = vld [vmem:[#allocation5 + $0x9e0] sm:$0xff]
    %v369 = vld [vmem:[#allocation5 + $0x9e8] sm:$0xff]
    %v370 = vld [vmem:[#allocation5 + $0x9f0] sm:$0xff]
    %v371 = vld [vmem:[#allocation5 + $0x9f8] sm:$0xff]
    %v372 = vld [vmem:[#allocation5 + $0xa00] sm:$0xff]
    %v373 = vld [vmem:[#allocation5 + $0xa08] sm:$0xff]
    %v374 = vld [vmem:[#allocation5 + $0xa10] sm:$0xff]
    %v375 = vld [vmem:[#allocation5 + $0xa18] sm:$0xff]
    %v376 = vld [vmem:[#allocation5 + $0xa20] sm:$0xff]
    %v377 = vld [vmem:[#allocation5 + $0xa28] sm:$0xff]
    %v378 = vld [vmem:[#allocation5 + $0xa30] sm:$0xff]
    %v379 = vld [vmem:[#allocation5 + $0xa38] sm:$0xff]
    %v380 = vld [vmem:[#allocation5 + $0xa40] sm:$0xff]
    %v381 = vld [vmem:[#allocation5 + $0xa48] sm:$0xff]
    %v382 = vld [vmem:[#allocation5 + $0xa50] sm:$0xff]
    %v383 = vld [vmem:[#allocation5 + $0xa58] sm:$0xff]
    %v384 = vld [vmem:[#allocation5 + $0xa60] sm:$0xff]
    %v385 = vld [vmem:[#allocation5 + $0xa68] sm:$0xff]
    %v386 = vld [vmem:[#allocation5 + $0xa70] sm:$0xff]
    %v387 = vld [vmem:[#allocation5 + $0xa78] sm:$0xff]
    %v388 = vld [vmem:[#allocation5 + $0xa80] sm:$0xff]
    %v389 = vld [vmem:[#allocation5 + $0xa88] sm:$0xff]
    %v390 = vld [vmem:[#allocation5 + $0xa90] sm:$0xff]
    %v391 = vld [vmem:[#allocation5 + $0xa98] sm:$0xff]
    %v392 = vld [vmem:[#allocation5 + $0xaa0] sm:$0xff]
    %v393 = vld [vmem:[#allocation5 + $0xaa8] sm:$0xff]
    %v394 = vld [vmem:[#allocation5 + $0xab0] sm:$0xff]
    %v395 = vld [vmem:[#allocation5 + $0xab8] sm:$0xff]
    %v396 = vld [vmem:[#allocation5 + $0xac0] sm:$0xff]
    %v397 = vld [vmem:[#allocation5 + $0xac8] sm:$0xff]
    %v398 = vld [vmem:[#allocation5 + $0xad0] sm:$0xff]
    %v399 = vld [vmem:[#allocation5 + $0xad8] sm:$0xff]
    %v400 = vld [vmem:[#allocation5 + $0xae0] sm:$0xff]
    %v401 = vld [vmem:[#allocation5 + $0xae8] sm:$0xff]
    %v402 = vld [vmem:[#allocation5 + $0xaf0] sm:$0xff]
    %v403 = vld [vmem:[#allocation5 + $0xaf8] sm:$0xff]
    %v404 = vld [vmem:[#allocation5 + $0xb00] sm:$0xff]
    %v405 = vld [vmem:[#allocation5 + $0xb08] sm:$0xff]
    %v406 = vld [vmem:[#allocation5 + $0xb10] sm:$0xff]
    %v407 = vld [vmem:[#allocation5 + $0xb18] sm:$0xff]
    %v408 = vld [vmem:[#allocation5 + $0xb20] sm:$0xff]
    %v409 = vld [vmem:[#allocation5 + $0xb28] sm:$0xff]
    %v410 = vld [vmem:[#allocation5 + $0xb30] sm:$0xff]
    %v411 = vld [vmem:[#allocation5 + $0xb38] sm:$0xff]
    %v412 = vld [vmem:[#allocation5 + $0xb40] sm:$0xff]
    %v413 = vld [vmem:[#allocation5 + $0xb48] sm:$0xff]
    %v414 = vld [vmem:[#allocation5 + $0xb50] sm:$0xff]
    %v415 = vld [vmem:[#allocation5 + $0xb58] sm:$0xff]
    %v416 = vld [vmem:[#allocation5 + $0xb60] sm:$0xff]
    %v417 = vld [vmem:[#allocation5 + $0xb68] sm:$0xff]
    %v418 = vld [vmem:[#allocation5 + $0xb70] sm:$0xff]
    %v419 = vld [vmem:[#allocation5 + $0xb78] sm:$0xff]
    %v420 = vld [vmem:[#allocation5 + $0xb80] sm:$0xff]
    %v421 = vld [vmem:[#allocation5 + $0xb88] sm:$0xff]
    %v422 = vld [vmem:[#allocation5 + $0xb90] sm:$0xff]
    %v423 = vld [vmem:[#allocation5 + $0xb98] sm:$0xff]
    %v424 = vld [vmem:[#allocation5 + $0xba0] sm:$0xff]
    %v425 = vld [vmem:[#allocation5 + $0xba8] sm:$0xff]
    %v426 = vld [vmem:[#allocation5 + $0xbb0] sm:$0xff]
    %v427 = vld [vmem:[#allocation5 + $0xbb8] sm:$0xff]
    %v428 = vld [vmem:[#allocation5 + $0xbc0] sm:$0xff]
    %v429 = vld [vmem:[#allocation5 + $0xbc8] sm:$0xff]
    %v430 = vld [vmem:[#allocation5 + $0xbd0] sm:$0xff]
    %v431 = vld [vmem:[#allocation5 + $0xbd8] sm:$0xff]
    %v432 = vld [vmem:[#allocation5 + $0xbe0] sm:$0xff]
    %v433 = vld [vmem:[#allocation5 + $0xbe8] sm:$0xff]
    %v434 = vld [vmem:[#allocation5 + $0xbf0] sm:$0xff]
    %v435 = vld [vmem:[#allocation5 + $0xbf8] sm:$0xff]
    %v820 = vunpack.c.l.b16 %v52
    %v821 = vunpack.c.h.b16 %v52
    %v822 = vunpack.c.l.b16 %v53
    %v823 = vunpack.c.h.b16 %v53
    %v824 = vunpack.c.l.b16 %v54
    %v825 = vunpack.c.h.b16 %v54
    %v826 = vunpack.c.l.b16 %v55
    %v827 = vunpack.c.h.b16 %v55
    %v828 = vunpack.c.l.b16 %v56
    %v829 = vunpack.c.h.b16 %v56
    %v830 = vunpack.c.l.b16 %v57
    %v831 = vunpack.c.h.b16 %v57
    %v832 = vunpack.c.l.b16 %v58
    %v833 = vunpack.c.h.b16 %v58
    %v834 = vunpack.c.l.b16 %v59
    %v835 = vunpack.c.h.b16 %v59
    %v836 = vunpack.c.l.b16 %v60
    %v837 = vunpack.c.h.b16 %v60
    %v838 = vunpack.c.l.b16 %v61
    %v839 = vunpack.c.h.b16 %v61
    %v840 = vunpack.c.l.b16 %v62
    %v841 = vunpack.c.h.b16 %v62
    %v842 = vunpack.c.l.b16 %v63
    %v843 = vunpack.c.h.b16 %v63
    %v844 = vunpack.c.l.b16 %v64
    %v845 = vunpack.c.h.b16 %v64
    %v846 = vunpack.c.l.b16 %v65
    %v847 = vunpack.c.h.b16 %v65
    %v848 = vunpack.c.l.b16 %v66
    %v849 = vunpack.c.h.b16 %v66
    %v850 = vunpack.c.l.b16 %v67
    %v851 = vunpack.c.h.b16 %v67
    %v852 = vunpack.c.l.b16 %v68
    %v853 = vunpack.c.h.b16 %v68
    %v854 = vunpack.c.l.b16 %v69
    %v855 = vunpack.c.h.b16 %v69
    %v856 = vunpack.c.l.b16 %v70
    %v857 = vunpack.c.h.b16 %v70
    %v858 = vunpack.c.l.b16 %v71
    %v859 = vunpack.c.h.b16 %v71
    %v860 = vunpack.c.l.b16 %v72
    %v861 = vunpack.c.h.b16 %v72
    %v862 = vunpack.c.l.b16 %v73
    %v863 = vunpack.c.h.b16 %v73
    %v864 = vunpack.c.l.b16 %v74
    %v865 = vunpack.c.h.b16 %v74
    %v866 = vunpack.c.l.b16 %v75
    %v867 = vunpack.c.h.b16 %v75
    %v868 = vunpack.c.l.b16 %v76
    %v869 = vunpack.c.h.b16 %v76
    %v870 = vunpack.c.l.b16 %v77
    %v871 = vunpack.c.h.b16 %v77
    %v872 = vunpack.c.l.b16 %v78
    %v873 = vunpack.c.h.b16 %v78
    %v874 = vunpack.c.l.b16 %v79
    %v875 = vunpack.c.h.b16 %v79
    %v876 = vunpack.c.l.b16 %v80
    %v877 = vunpack.c.h.b16 %v80
    %v878 = vunpack.c.l.b16 %v81
    %v879 = vunpack.c.h.b16 %v81
    %v880 = vunpack.c.l.b16 %v82
    %v881 = vunpack.c.h.b16 %v82
    %v882 = vunpack.c.l.b16 %v83
    %v883 = vunpack.c.h.b16 %v83
    %v884 = vunpack.c.l.b16 %v84
    %v885 = vunpack.c.h.b16 %v84
    %v886 = vunpack.c.l.b16 %v85
    %v887 = vunpack.c.h.b16 %v85
    %v888 = vunpack.c.l.b16 %v86
    %v889 = vunpack.c.h.b16 %v86
    %v890 = vunpack.c.l.b16 %v87
    %v891 = vunpack.c.h.b16 %v87
    %v892 = vunpack.c.l.b16 %v88
    %v893 = vunpack.c.h.b16 %v88
    %v894 = vunpack.c.l.b16 %v89
    %v895 = vunpack.c.h.b16 %v89
    %v896 = vunpack.c.l.b16 %v90
    %v897 = vunpack.c.h.b16 %v90
    %v898 = vunpack.c.l.b16 %v91
    %v899 = vunpack.c.h.b16 %v91
    %v900 = vunpack.c.l.b16 %v92
    %v901 = vunpack.c.h.b16 %v92
    %v902 = vunpack.c.l.b16 %v93
    %v903 = vunpack.c.h.b16 %v93
    %v904 = vunpack.c.l.b16 %v94
    %v905 = vunpack.c.h.b16 %v94
    %v906 = vunpack.c.l.b16 %v95
    %v907 = vunpack.c.h.b16 %v95
    %v908 = vunpack.c.l.b16 %v96
    %v909 = vunpack.c.h.b16 %v96
    %v910 = vunpack.c.l.b16 %v97
    %v911 = vunpack.c.h.b16 %v97
    %v912 = vunpack.c.l.b16 %v98
    %v913 = vunpack.c.h.b16 %v98
    %v914 = vunpack.c.l.b16 %v99
    %v915 = vunpack.c.h.b16 %v99
    %v916 = vunpack.c.l.b16 %v100
    %v917 = vunpack.c.h.b16 %v100
    %v918 = vunpack.c.l.b16 %v101
    %v919 = vunpack.c.h.b16 %v101
    %v920 = vunpack.c.l.b16 %v102
    %v921 = vunpack.c.h.b16 %v102
    %v922 = vunpack.c.l.b16 %v103
    %v923 = vunpack.c.h.b16 %v103
    %v924 = vunpack.c.l.b16 %v104
    %v925 = vunpack.c.h.b16 %v104
    %v926 = vunpack.c.l.b16 %v105
    %v927 = vunpack.c.h.b16 %v105
    %v928 = vunpack.c.l.b16 %v106
    %v929 = vunpack.c.h.b16 %v106
    %v930 = vunpack.c.l.b16 %v107
    %v931 = vunpack.c.h.b16 %v107
    %v932 = vunpack.c.l.b16 %v108
    %v933 = vunpack.c.h.b16 %v108
    %v934 = vunpack.c.l.b16 %v109
    %v935 = vunpack.c.h.b16 %v109
    %v936 = vunpack.c.l.b16 %v110
    %v937 = vunpack.c.h.b16 %v110
    %v938 = vunpack.c.l.b16 %v111
    %v939 = vunpack.c.h.b16 %v111
    %v940 = vunpack.c.l.b16 %v112
    %v941 = vunpack.c.h.b16 %v112
    %v942 = vunpack.c.l.b16 %v113
    %v943 = vunpack.c.h.b16 %v113
    %v944 = vunpack.c.l.b16 %v114
    %v945 = vunpack.c.h.b16 %v114
    %v946 = vunpack.c.l.b16 %v115
    %v947 = vunpack.c.h.b16 %v115
    %v948 = vunpack.c.l.b16 %v116
    %v949 = vunpack.c.h.b16 %v116
    %v950 = vunpack.c.l.b16 %v117
    %v951 = vunpack.c.h.b16 %v117
    %v952 = vunpack.c.l.b16 %v118
    %v953 = vunpack.c.h.b16 %v118
    %v954 = vunpack.c.l.b16 %v119
    %v955 = vunpack.c.h.b16 %v119
    %v956 = vunpack.c.l.b16 %v120
    %v957 = vunpack.c.h.b16 %v120
    %v958 = vunpack.c.l.b16 %v121
    %v959 = vunpack.c.h.b16 %v121
    %v960 = vunpack.c.l.b16 %v122
    %v961 = vunpack.c.h.b16 %v122
    %v962 = vunpack.c.l.b16 %v123
    %v963 = vunpack.c.h.b16 %v123
    %v964 = vunpack.c.l.b16 %v124
    %v965 = vunpack.c.h.b16 %v124
    %v966 = vunpack.c.l.b16 %v125
    %v967 = vunpack.c.h.b16 %v125
    %v968 = vunpack.c.l.b16 %v126
    %v969 = vunpack.c.h.b16 %v126
    %v970 = vunpack.c.l.b16 %v127
    %v971 = vunpack.c.h.b16 %v127
    %v972 = vunpack.c.l.b16 %v128
    %v973 = vunpack.c.h.b16 %v128
    %v974 = vunpack.c.l.b16 %v129
    %v975 = vunpack.c.h.b16 %v129
    %v976 = vunpack.c.l.b16 %v130
    %v977 = vunpack.c.h.b16 %v130
    %v978 = vunpack.c.l.b16 %v131
    %v979 = vunpack.c.h.b16 %v131
    %v980 = vunpack.c.l.b16 %v132
    %v981 = vunpack.c.h.b16 %v132
    %v982 = vunpack.c.l.b16 %v133
    %v983 = vunpack.c.h.b16 %v133
    %v984 = vunpack.c.l.b16 %v134
    %v985 = vunpack.c.h.b16 %v134
    %v986 = vunpack.c.l.b16 %v135
    %v987 = vunpack.c.h.b16 %v135
    %v988 = vunpack.c.l.b16 %v136
    %v989 = vunpack.c.h.b16 %v136
    %v990 = vunpack.c.l.b16 %v137
    %v991 = vunpack.c.h.b16 %v137
    %v992 = vunpack.c.l.b16 %v138
    %v993 = vunpack.c.h.b16 %v138
    %v994 = vunpack.c.l.b16 %v139
    %v995 = vunpack.c.h.b16 %v139
    %v996 = vunpack.c.l.b16 %v140
    %v997 = vunpack.c.h.b16 %v140
    %v998 = vunpack.c.l.b16 %v141
    %v999 = vunpack.c.h.b16 %v141
    %v1000 = vunpack.c.l.b16 %v142
    %v1001 = vunpack.c.h.b16 %v142
    %v1002 = vunpack.c.l.b16 %v143
    %v1003 = vunpack.c.h.b16 %v143
    %v1004 = vunpack.c.l.b16 %v144
    %v1005 = vunpack.c.h.b16 %v144
    %v1006 = vunpack.c.l.b16 %v145
    %v1007 = vunpack.c.h.b16 %v145
    %v1008 = vunpack.c.l.b16 %v146
    %v1009 = vunpack.c.h.b16 %v146
    %v1010 = vunpack.c.l.b16 %v147
    %v1011 = vunpack.c.h.b16 %v147
    %v1012 = vunpack.c.l.b16 %v148
    %v1013 = vunpack.c.h.b16 %v148
    %v1014 = vunpack.c.l.b16 %v149
    %v1015 = vunpack.c.h.b16 %v149
    %v1016 = vunpack.c.l.b16 %v150
    %v1017 = vunpack.c.h.b16 %v150
    %v1018 = vunpack.c.l.b16 %v151
    %v1019 = vunpack.c.h.b16 %v151
    %v1020 = vunpack.c.l.b16 %v152
    %v1021 = vunpack.c.h.b16 %v152
    %v1022 = vunpack.c.l.b16 %v153
    %v1023 = vunpack.c.h.b16 %v153
    %v1024 = vunpack.c.l.b16 %v154
    %v1025 = vunpack.c.h.b16 %v154
    %v1026 = vunpack.c.l.b16 %v155
    %v1027 = vunpack.c.h.b16 %v155
    %v1028 = vunpack.c.l.b16 %v156
    %v1029 = vunpack.c.h.b16 %v156
    %v1030 = vunpack.c.l.b16 %v157
    %v1031 = vunpack.c.h.b16 %v157
    %v1032 = vunpack.c.l.b16 %v158
    %v1033 = vunpack.c.h.b16 %v158
    %v1034 = vunpack.c.l.b16 %v159
    %v1035 = vunpack.c.h.b16 %v159
    %v1036 = vunpack.c.l.b16 %v160
    %v1037 = vunpack.c.h.b16 %v160
    %v1038 = vunpack.c.l.b16 %v161
    %v1039 = vunpack.c.h.b16 %v161
    %v1040 = vunpack.c.l.b16 %v162
    %v1041 = vunpack.c.h.b16 %v162
    %v1042 = vunpack.c.l.b16 %v163
    %v1043 = vunpack.c.h.b16 %v163
    %v1044 = vunpack.c.l.b16 %v164
    %v1045 = vunpack.c.h.b16 %v164
    %v1046 = vunpack.c.l.b16 %v165
    %v1047 = vunpack.c.h.b16 %v165
    %v1048 = vunpack.c.l.b16 %v166
    %v1049 = vunpack.c.h.b16 %v166
    %v1050 = vunpack.c.l.b16 %v167
    %v1051 = vunpack.c.h.b16 %v167
    %v1052 = vunpack.c.l.b16 %v168
    %v1053 = vunpack.c.h.b16 %v168
    %v1054 = vunpack.c.l.b16 %v169
    %v1055 = vunpack.c.h.b16 %v169
    %v1056 = vunpack.c.l.b16 %v170
    %v1057 = vunpack.c.h.b16 %v170
    %v1058 = vunpack.c.l.b16 %v171
    %v1059 = vunpack.c.h.b16 %v171
    %v1060 = vunpack.c.l.b16 %v172
    %v1061 = vunpack.c.h.b16 %v172
    %v1062 = vunpack.c.l.b16 %v173
    %v1063 = vunpack.c.h.b16 %v173
    %v1064 = vunpack.c.l.b16 %v174
    %v1065 = vunpack.c.h.b16 %v174
    %v1066 = vunpack.c.l.b16 %v175
    %v1067 = vunpack.c.h.b16 %v175
    %v1068 = vunpack.c.l.b16 %v176
    %v1069 = vunpack.c.h.b16 %v176
    %v1070 = vunpack.c.l.b16 %v177
    %v1071 = vunpack.c.h.b16 %v177
    %v1072 = vunpack.c.l.b16 %v178
    %v1073 = vunpack.c.h.b16 %v178
    %v1074 = vunpack.c.l.b16 %v179
    %v1075 = vunpack.c.h.b16 %v179
    %v1076 = vunpack.c.l.b16 %v180
    %v1077 = vunpack.c.h.b16 %v180
    %v1078 = vunpack.c.l.b16 %v181
    %v1079 = vunpack.c.h.b16 %v181
    %v1080 = vunpack.c.l.b16 %v182
    %v1081 = vunpack.c.h.b16 %v182
    %v1082 = vunpack.c.l.b16 %v183
    %v1083 = vunpack.c.h.b16 %v183
    %v1084 = vunpack.c.l.b16 %v184
    %v1085 = vunpack.c.h.b16 %v184
    %v1086 = vunpack.c.l.b16 %v185
    %v1087 = vunpack.c.h.b16 %v185
    %v1088 = vunpack.c.l.b16 %v186
    %v1089 = vunpack.c.h.b16 %v186
    %v1090 = vunpack.c.l.b16 %v187
    %v1091 = vunpack.c.h.b16 %v187
    %v1092 = vunpack.c.l.b16 %v188
    %v1093 = vunpack.c.h.b16 %v188
    %v1094 = vunpack.c.l.b16 %v189
    %v1095 = vunpack.c.h.b16 %v189
    %v1096 = vunpack.c.l.b16 %v190
    %v1097 = vunpack.c.h.b16 %v190
    %v1098 = vunpack.c.l.b16 %v191
    %v1099 = vunpack.c.h.b16 %v191
    %v1100 = vunpack.c.l.b16 %v192
    %v1101 = vunpack.c.h.b16 %v192
    %v1102 = vunpack.c.l.b16 %v193
    %v1103 = vunpack.c.h.b16 %v193
    %v1104 = vunpack.c.l.b16 %v194
    %v1105 = vunpack.c.h.b16 %v194
    %v1106 = vunpack.c.l.b16 %v195
    %v1107 = vunpack.c.h.b16 %v195
    %v1108 = vunpack.c.l.b16 %v196
    %v1109 = vunpack.c.h.b16 %v196
    %v1110 = vunpack.c.l.b16 %v197
    %v1111 = vunpack.c.h.b16 %v197
    %v1112 = vunpack.c.l.b16 %v198
    %v1113 = vunpack.c.h.b16 %v198
    %v1114 = vunpack.c.l.b16 %v199
    %v1115 = vunpack.c.h.b16 %v199
    %v1116 = vunpack.c.l.b16 %v200
    %v1117 = vunpack.c.h.b16 %v200
    %v1118 = vunpack.c.l.b16 %v201
    %v1119 = vunpack.c.h.b16 %v201
    %v1120 = vunpack.c.l.b16 %v202
    %v1121 = vunpack.c.h.b16 %v202
    %v1122 = vunpack.c.l.b16 %v203
    %v1123 = vunpack.c.h.b16 %v203
    %v1124 = vunpack.c.l.b16 %v204
    %v1125 = vunpack.c.h.b16 %v204
    %v1126 = vunpack.c.l.b16 %v205
    %v1127 = vunpack.c.h.b16 %v205
    %v1128 = vunpack.c.l.b16 %v206
    %v1129 = vunpack.c.h.b16 %v206
    %v1130 = vunpack.c.l.b16 %v207
    %v1131 = vunpack.c.h.b16 %v207
    %v1132 = vunpack.c.l.b16 %v208
    %v1133 = vunpack.c.h.b16 %v208
    %v1134 = vunpack.c.l.b16 %v209
    %v1135 = vunpack.c.h.b16 %v209
    %v1136 = vunpack.c.l.b16 %v210
    %v1137 = vunpack.c.h.b16 %v210
    %v1138 = vunpack.c.l.b16 %v211
    %v1139 = vunpack.c.h.b16 %v211
    %v1140 = vunpack.c.l.b16 %v212
    %v1141 = vunpack.c.h.b16 %v212
    %v1142 = vunpack.c.l.b16 %v213
    %v1143 = vunpack.c.h.b16 %v213
    %v1144 = vunpack.c.l.b16 %v214
    %v1145 = vunpack.c.h.b16 %v214
    %v1146 = vunpack.c.l.b16 %v215
    %v1147 = vunpack.c.h.b16 %v215
    %v1148 = vunpack.c.l.b16 %v216
    %v1149 = vunpack.c.h.b16 %v216
    %v1150 = vunpack.c.l.b16 %v217
    %v1151 = vunpack.c.h.b16 %v217
    %v1152 = vunpack.c.l.b16 %v218
    %v1153 = vunpack.c.h.b16 %v218
    %v1154 = vunpack.c.l.b16 %v219
    %v1155 = vunpack.c.h.b16 %v219
    %v1156 = vunpack.c.l.b16 %v220
    %v1157 = vunpack.c.h.b16 %v220
    %v1158 = vunpack.c.l.b16 %v221
    %v1159 = vunpack.c.h.b16 %v221
    %v1160 = vunpack.c.l.b16 %v222
    %v1161 = vunpack.c.h.b16 %v222
    %v1162 = vunpack.c.l.b16 %v223
    %v1163 = vunpack.c.h.b16 %v223
    %v1164 = vunpack.c.l.b16 %v224
    %v1165 = vunpack.c.h.b16 %v224
    %v1166 = vunpack.c.l.b16 %v225
    %v1167 = vunpack.c.h.b16 %v225
    %v1168 = vunpack.c.l.b16 %v226
    %v1169 = vunpack.c.h.b16 %v226
    %v1170 = vunpack.c.l.b16 %v227
    %v1171 = vunpack.c.h.b16 %v227
    %v1172 = vunpack.c.l.b16 %v228
    %v1173 = vunpack.c.h.b16 %v228
    %v1174 = vunpack.c.l.b16 %v229
    %v1175 = vunpack.c.h.b16 %v229
    %v1176 = vunpack.c.l.b16 %v230
    %v1177 = vunpack.c.h.b16 %v230
    %v1178 = vunpack.c.l.b16 %v231
    %v1179 = vunpack.c.h.b16 %v231
    %v1180 = vunpack.c.l.b16 %v232
    %v1181 = vunpack.c.h.b16 %v232
    %v1182 = vunpack.c.l.b16 %v233
    %v1183 = vunpack.c.h.b16 %v233
    %v1184 = vunpack.c.l.b16 %v234
    %v1185 = vunpack.c.h.b16 %v234
    %v1186 = vunpack.c.l.b16 %v235
    %v1187 = vunpack.c.h.b16 %v235
    %v1188 = vunpack.c.l.b16 %v236
    %v1189 = vunpack.c.h.b16 %v236
    %v1190 = vunpack.c.l.b16 %v237
    %v1191 = vunpack.c.h.b16 %v237
    %v1192 = vunpack.c.l.b16 %v238
    %v1193 = vunpack.c.h.b16 %v238
    %v1194 = vunpack.c.l.b16 %v239
    %v1195 = vunpack.c.h.b16 %v239
    %v1196 = vunpack.c.l.b16 %v240
    %v1197 = vunpack.c.h.b16 %v240
    %v1198 = vunpack.c.l.b16 %v241
    %v1199 = vunpack.c.h.b16 %v241
    %v1200 = vunpack.c.l.b16 %v242
    %v1201 = vunpack.c.h.b16 %v242
    %v1202 = vunpack.c.l.b16 %v243
    %v1203 = vunpack.c.h.b16 %v243
    %v1204 = vunpack.c.l.b16 %v244
    %v1205 = vunpack.c.h.b16 %v244
    %v1206 = vunpack.c.l.b16 %v245
    %v1207 = vunpack.c.h.b16 %v245
    %v1208 = vunpack.c.l.b16 %v246
    %v1209 = vunpack.c.h.b16 %v246
    %v1210 = vunpack.c.l.b16 %v247
    %v1211 = vunpack.c.h.b16 %v247
    %v1212 = vunpack.c.l.b16 %v248
    %v1213 = vunpack.c.h.b16 %v248
    %v1214 = vunpack.c.l.b16 %v249
    %v1215 = vunpack.c.h.b16 %v249
    %v1216 = vunpack.c.l.b16 %v250
    %v1217 = vunpack.c.h.b16 %v250
    %v1218 = vunpack.c.l.b16 %v251
    %v1219 = vunpack.c.h.b16 %v251
    %v1220 = vunpack.c.l.b16 %v252
    %v1221 = vunpack.c.h.b16 %v252
    %v1222 = vunpack.c.l.b16 %v253
    %v1223 = vunpack.c.h.b16 %v253
    %v1224 = vunpack.c.l.b16 %v254
    %v1225 = vunpack.c.h.b16 %v254
    %v1226 = vunpack.c.l.b16 %v255
    %v1227 = vunpack.c.h.b16 %v255
    %v1228 = vunpack.c.l.b16 %v256
    %v1229 = vunpack.c.h.b16 %v256
    %v1230 = vunpack.c.l.b16 %v257
    %v1231 = vunpack.c.h.b16 %v257
    %v1232 = vunpack.c.l.b16 %v258
    %v1233 = vunpack.c.h.b16 %v258
    %v1234 = vunpack.c.l.b16 %v259
    %v1235 = vunpack.c.h.b16 %v259
    %v1236 = vunpack.c.l.b16 %v260
    %v1237 = vunpack.c.h.b16 %v260
    %v1238 = vunpack.c.l.b16 %v261
    %v1239 = vunpack.c.h.b16 %v261
    %v1240 = vunpack.c.l.b16 %v262
    %v1241 = vunpack.c.h.b16 %v262
    %v1242 = vunpack.c.l.b16 %v263
    %v1243 = vunpack.c.h.b16 %v263
    %v1244 = vunpack.c.l.b16 %v264
    %v1245 = vunpack.c.h.b16 %v264
    %v1246 = vunpack.c.l.b16 %v265
    %v1247 = vunpack.c.h.b16 %v265
    %v1248 = vunpack.c.l.b16 %v266
    %v1249 = vunpack.c.h.b16 %v266
    %v1250 = vunpack.c.l.b16 %v267
    %v1251 = vunpack.c.h.b16 %v267
    %v1252 = vunpack.c.l.b16 %v268
    %v1253 = vunpack.c.h.b16 %v268
    %v1254 = vunpack.c.l.b16 %v269
    %v1255 = vunpack.c.h.b16 %v269
    %v1256 = vunpack.c.l.b16 %v270
    %v1257 = vunpack.c.h.b16 %v270
    %v1258 = vunpack.c.l.b16 %v271
    %v1259 = vunpack.c.h.b16 %v271
    %v1260 = vunpack.c.l.b16 %v272
    %v1261 = vunpack.c.h.b16 %v272
    %v1262 = vunpack.c.l.b16 %v273
    %v1263 = vunpack.c.h.b16 %v273
    %v1264 = vunpack.c.l.b16 %v274
    %v1265 = vunpack.c.h.b16 %v274
    %v1266 = vunpack.c.l.b16 %v275
    %v1267 = vunpack.c.h.b16 %v275
    %v1268 = vunpack.c.l.b16 %v276
    %v1269 = vunpack.c.h.b16 %v276
    %v1270 = vunpack.c.l.b16 %v277
    %v1271 = vunpack.c.h.b16 %v277
    %v1272 = vunpack.c.l.b16 %v278
    %v1273 = vunpack.c.h.b16 %v278
    %v1274 = vunpack.c.l.b16 %v279
    %v1275 = vunpack.c.h.b16 %v279
    %v1276 = vunpack.c.l.b16 %v280
    %v1277 = vunpack.c.h.b16 %v280
    %v1278 = vunpack.c.l.b16 %v281
    %v1279 = vunpack.c.h.b16 %v281
    %v1280 = vunpack.c.l.b16 %v282
    %v1281 = vunpack.c.h.b16 %v282
    %v1282 = vunpack.c.l.b16 %v283
    %v1283 = vunpack.c.h.b16 %v283
    %v1284 = vunpack.c.l.b16 %v284
    %v1285 = vunpack.c.h.b16 %v284
    %v1286 = vunpack.c.l.b16 %v285
    %v1287 = vunpack.c.h.b16 %v285
    %v1288 = vunpack.c.l.b16 %v286
    %v1289 = vunpack.c.h.b16 %v286
    %v1290 = vunpack.c.l.b16 %v287
    %v1291 = vunpack.c.h.b16 %v287
    %v1292 = vunpack.c.l.b16 %v288
    %v1293 = vunpack.c.h.b16 %v288
    %v1294 = vunpack.c.l.b16 %v289
    %v1295 = vunpack.c.h.b16 %v289
    %v1296 = vunpack.c.l.b16 %v290
    %v1297 = vunpack.c.h.b16 %v290
    %v1298 = vunpack.c.l.b16 %v291
    %v1299 = vunpack.c.h.b16 %v291
    %v1300 = vunpack.c.l.b16 %v292
    %v1301 = vunpack.c.h.b16 %v292
    %v1302 = vunpack.c.l.b16 %v293
    %v1303 = vunpack.c.h.b16 %v293
    %v1304 = vunpack.c.l.b16 %v294
    %v1305 = vunpack.c.h.b16 %v294
    %v1306 = vunpack.c.l.b16 %v295
    %v1307 = vunpack.c.h.b16 %v295
    %v1308 = vunpack.c.l.b16 %v296
    %v1309 = vunpack.c.h.b16 %v296
    %v1310 = vunpack.c.l.b16 %v297
    %v1311 = vunpack.c.h.b16 %v297
    %v1312 = vunpack.c.l.b16 %v298
    %v1313 = vunpack.c.h.b16 %v298
    %v1314 = vunpack.c.l.b16 %v299
    %v1315 = vunpack.c.h.b16 %v299
    %v1316 = vunpack.c.l.b16 %v300
    %v1317 = vunpack.c.h.b16 %v300
    %v1318 = vunpack.c.l.b16 %v301
    %v1319 = vunpack.c.h.b16 %v301
    %v1320 = vunpack.c.l.b16 %v302
    %v1321 = vunpack.c.h.b16 %v302
    %v1322 = vunpack.c.l.b16 %v303
    %v1323 = vunpack.c.h.b16 %v303
    %v1324 = vunpack.c.l.b16 %v304
    %v1325 = vunpack.c.h.b16 %v304
    %v1326 = vunpack.c.l.b16 %v305
    %v1327 = vunpack.c.h.b16 %v305
    %v1328 = vunpack.c.l.b16 %v306
    %v1329 = vunpack.c.h.b16 %v306
    %v1330 = vunpack.c.l.b16 %v307
    %v1331 = vunpack.c.h.b16 %v307
    %v1332 = vunpack.c.l.b16 %v308
    %v1333 = vunpack.c.h.b16 %v308
    %v1334 = vunpack.c.l.b16 %v309
    %v1335 = vunpack.c.h.b16 %v309
    %v1336 = vunpack.c.l.b16 %v310
    %v1337 = vunpack.c.h.b16 %v310
    %v1338 = vunpack.c.l.b16 %v311
    %v1339 = vunpack.c.h.b16 %v311
    %v1340 = vunpack.c.l.b16 %v312
    %v1341 = vunpack.c.h.b16 %v312
    %v1342 = vunpack.c.l.b16 %v313
    %v1343 = vunpack.c.h.b16 %v313
    %v1344 = vunpack.c.l.b16 %v314
    %v1345 = vunpack.c.h.b16 %v314
    %v1346 = vunpack.c.l.b16 %v315
    %v1347 = vunpack.c.h.b16 %v315
    %v1348 = vunpack.c.l.b16 %v316
    %v1349 = vunpack.c.h.b16 %v316
    %v1350 = vunpack.c.l.b16 %v317
    %v1351 = vunpack.c.h.b16 %v317
    %v1352 = vunpack.c.l.b16 %v318
    %v1353 = vunpack.c.h.b16 %v318
    %v1354 = vunpack.c.l.b16 %v319
    %v1355 = vunpack.c.h.b16 %v319
    %v1356 = vunpack.c.l.b16 %v320
    %v1357 = vunpack.c.h.b16 %v320
    %v1358 = vunpack.c.l.b16 %v321
    %v1359 = vunpack.c.h.b16 %v321
    %v1360 = vunpack.c.l.b16 %v322
    %v1361 = vunpack.c.h.b16 %v322
    %v1362 = vunpack.c.l.b16 %v323
    %v1363 = vunpack.c.h.b16 %v323
    %v1364 = vunpack.c.l.b16 %v324
    %v1365 = vunpack.c.h.b16 %v324
    %v1366 = vunpack.c.l.b16 %v325
    %v1367 = vunpack.c.h.b16 %v325
    %v1368 = vunpack.c.l.b16 %v326
    %v1369 = vunpack.c.h.b16 %v326
    %v1370 = vunpack.c.l.b16 %v327
    %v1371 = vunpack.c.h.b16 %v327
    %v1372 = vunpack.c.l.b16 %v328
    %v1373 = vunpack.c.h.b16 %v328
    %v1374 = vunpack.c.l.b16 %v329
    %v1375 = vunpack.c.h.b16 %v329
    %v1376 = vunpack.c.l.b16 %v330
    %v1377 = vunpack.c.h.b16 %v330
    %v1378 = vunpack.c.l.b16 %v331
    %v1379 = vunpack.c.h.b16 %v331
    %v1380 = vunpack.c.l.b16 %v332
    %v1381 = vunpack.c.h.b16 %v332
    %v1382 = vunpack.c.l.b16 %v333
    %v1383 = vunpack.c.h.b16 %v333
    %v1384 = vunpack.c.l.b16 %v334
    %v1385 = vunpack.c.h.b16 %v334
    %v1386 = vunpack.c.l.b16 %v335
    %v1387 = vunpack.c.h.b16 %v335
    %v1388 = vunpack.c.l.b16 %v336
    %v1389 = vunpack.c.h.b16 %v336
    %v1390 = vunpack.c.l.b16 %v337
    %v1391 = vunpack.c.h.b16 %v337
    %v1392 = vunpack.c.l.b16 %v338
    %v1393 = vunpack.c.h.b16 %v338
    %v1394 = vunpack.c.l.b16 %v339
    %v1395 = vunpack.c.h.b16 %v339
    %v1396 = vunpack.c.l.b16 %v340
    %v1397 = vunpack.c.h.b16 %v340
    %v1398 = vunpack.c.l.b16 %v341
    %v1399 = vunpack.c.h.b16 %v341
    %v1400 = vunpack.c.l.b16 %v342
    %v1401 = vunpack.c.h.b16 %v342
    %v1402 = vunpack.c.l.b16 %v343
    %v1403 = vunpack.c.h.b16 %v343
    %v1404 = vunpack.c.l.b16 %v344
    %v1405 = vunpack.c.h.b16 %v344
    %v1406 = vunpack.c.l.b16 %v345
    %v1407 = vunpack.c.h.b16 %v345
    %v1408 = vunpack.c.l.b16 %v346
    %v1409 = vunpack.c.h.b16 %v346
    %v1410 = vunpack.c.l.b16 %v347
    %v1411 = vunpack.c.h.b16 %v347
    %v1412 = vunpack.c.l.b16 %v348
    %v1413 = vunpack.c.h.b16 %v348
    %v1414 = vunpack.c.l.b16 %v349
    %v1415 = vunpack.c.h.b16 %v349
    %v1416 = vunpack.c.l.b16 %v350
    %v1417 = vunpack.c.h.b16 %v350
    %v1418 = vunpack.c.l.b16 %v351
    %v1419 = vunpack.c.h.b16 %v351
    %v1420 = vunpack.c.l.b16 %v352
    %v1421 = vunpack.c.h.b16 %v352
    %v1422 = vunpack.c.l.b16 %v353
    %v1423 = vunpack.c.h.b16 %v353
    %v1424 = vunpack.c.l.b16 %v354
    %v1425 = vunpack.c.h.b16 %v354
    %v1426 = vunpack.c.l.b16 %v355
    %v1427 = vunpack.c.h.b16 %v355
    %v1428 = vunpack.c.l.b16 %v356
    %v1429 = vunpack.c.h.b16 %v356
    %v1430 = vunpack.c.l.b16 %v357
    %v1431 = vunpack.c.h.b16 %v357
    %v1432 = vunpack.c.l.b16 %v358
    %v1433 = vunpack.c.h.b16 %v358
    %v1434 = vunpack.c.l.b16 %v359
    %v1435 = vunpack.c.h.b16 %v359
    %v1436 = vunpack.c.l.b16 %v360
    %v1437 = vunpack.c.h.b16 %v360
    %v1438 = vunpack.c.l.b16 %v361
    %v1439 = vunpack.c.h.b16 %v361
    %v1440 = vunpack.c.l.b16 %v362
    %v1441 = vunpack.c.h.b16 %v362
    %v1442 = vunpack.c.l.b16 %v363
    %v1443 = vunpack.c.h.b16 %v363
    %v1444 = vunpack.c.l.b16 %v364
    %v1445 = vunpack.c.h.b16 %v364
    %v1446 = vunpack.c.l.b16 %v365
    %v1447 = vunpack.c.h.b16 %v365
    %v1448 = vunpack.c.l.b16 %v366
    %v1449 = vunpack.c.h.b16 %v366
    %v1450 = vunpack.c.l.b16 %v367
    %v1451 = vunpack.c.h.b16 %v367
    %v1452 = vunpack.c.l.b16 %v368
    %v1453 = vunpack.c.h.b16 %v368
    %v1454 = vunpack.c.l.b16 %v369
    %v1455 = vunpack.c.h.b16 %v369
    %v1456 = vunpack.c.l.b16 %v370
    %v1457 = vunpack.c.h.b16 %v370
    %v1458 = vunpack.c.l.b16 %v371
    %v1459 = vunpack.c.h.b16 %v371
    %v1460 = vunpack.c.l.b16 %v372
    %v1461 = vunpack.c.h.b16 %v372
    %v1462 = vunpack.c.l.b16 %v373
    %v1463 = vunpack.c.h.b16 %v373
    %v1464 = vunpack.c.l.b16 %v374
    %v1465 = vunpack.c.h.b16 %v374
    %v1466 = vunpack.c.l.b16 %v375
    %v1467 = vunpack.c.h.b16 %v375
    %v1468 = vunpack.c.l.b16 %v376
    %v1469 = vunpack.c.h.b16 %v376
    %v1470 = vunpack.c.l.b16 %v377
    %v1471 = vunpack.c.h.b16 %v377
    %v1472 = vunpack.c.l.b16 %v378
    %v1473 = vunpack.c.h.b16 %v378
    %v1474 = vunpack.c.l.b16 %v379
    %v1475 = vunpack.c.h.b16 %v379
    %v1476 = vunpack.c.l.b16 %v380
    %v1477 = vunpack.c.h.b16 %v380
    %v1478 = vunpack.c.l.b16 %v381
    %v1479 = vunpack.c.h.b16 %v381
    %v1480 = vunpack.c.l.b16 %v382
    %v1481 = vunpack.c.h.b16 %v382
    %v1482 = vunpack.c.l.b16 %v383
    %v1483 = vunpack.c.h.b16 %v383
    %v1484 = vunpack.c.l.b16 %v384
    %v1485 = vunpack.c.h.b16 %v384
    %v1486 = vunpack.c.l.b16 %v385
    %v1487 = vunpack.c.h.b16 %v385
    %v1488 = vunpack.c.l.b16 %v386
    %v1489 = vunpack.c.h.b16 %v386
    %v1490 = vunpack.c.l.b16 %v387
    %v1491 = vunpack.c.h.b16 %v387
    %v1492 = vunpack.c.l.b16 %v388
    %v1493 = vunpack.c.h.b16 %v388
    %v1494 = vunpack.c.l.b16 %v389
    %v1495 = vunpack.c.h.b16 %v389
    %v1496 = vunpack.c.l.b16 %v390
    %v1497 = vunpack.c.h.b16 %v390
    %v1498 = vunpack.c.l.b16 %v391
    %v1499 = vunpack.c.h.b16 %v391
    %v1500 = vunpack.c.l.b16 %v392
    %v1501 = vunpack.c.h.b16 %v392
    %v1502 = vunpack.c.l.b16 %v393
    %v1503 = vunpack.c.h.b16 %v393
    %v1504 = vunpack.c.l.b16 %v394
    %v1505 = vunpack.c.h.b16 %v394
    %v1506 = vunpack.c.l.b16 %v395
    %v1507 = vunpack.c.h.b16 %v395
    %v1508 = vunpack.c.l.b16 %v396
    %v1509 = vunpack.c.h.b16 %v396
    %v1510 = vunpack.c.l.b16 %v397
    %v1511 = vunpack.c.h.b16 %v397
    %v1512 = vunpack.c.l.b16 %v398
    %v1513 = vunpack.c.h.b16 %v398
    %v1514 = vunpack.c.l.b16 %v399
    %v1515 = vunpack.c.h.b16 %v399
    %v1516 = vunpack.c.l.b16 %v400
    %v1517 = vunpack.c.h.b16 %v400
    %v1518 = vunpack.c.l.b16 %v401
    %v1519 = vunpack.c.h.b16 %v401
    %v1520 = vunpack.c.l.b16 %v402
    %v1521 = vunpack.c.h.b16 %v402
    %v1522 = vunpack.c.l.b16 %v403
    %v1523 = vunpack.c.h.b16 %v403
    %v1524 = vunpack.c.l.b16 %v404
    %v1525 = vunpack.c.h.b16 %v404
    %v1526 = vunpack.c.l.b16 %v405
    %v1527 = vunpack.c.h.b16 %v405
    %v1528 = vunpack.c.l.b16 %v406
    %v1529 = vunpack.c.h.b16 %v406
    %v1530 = vunpack.c.l.b16 %v407
    %v1531 = vunpack.c.h.b16 %v407
    %v1532 = vunpack.c.l.b16 %v408
    %v1533 = vunpack.c.h.b16 %v408
    %v1534 = vunpack.c.l.b16 %v409
    %v1535 = vunpack.c.h.b16 %v409
    %v1536 = vunpack.c.l.b16 %v410
    %v1537 = vunpack.c.h.b16 %v410
    %v1538 = vunpack.c.l.b16 %v411
    %v1539 = vunpack.c.h.b16 %v411
    %v1540 = vunpack.c.l.b16 %v412
    %v1541 = vunpack.c.h.b16 %v412
    %v1542 = vunpack.c.l.b16 %v413
    %v1543 = vunpack.c.h.b16 %v413
    %v1544 = vunpack.c.l.b16 %v414
    %v1545 = vunpack.c.h.b16 %v414
    %v1546 = vunpack.c.l.b16 %v415
    %v1547 = vunpack.c.h.b16 %v415
    %v1548 = vunpack.c.l.b16 %v416
    %v1549 = vunpack.c.h.b16 %v416
    %v1550 = vunpack.c.l.b16 %v417
    %v1551 = vunpack.c.h.b16 %v417
    %v1552 = vunpack.c.l.b16 %v418
    %v1553 = vunpack.c.h.b16 %v418
    %v1554 = vunpack.c.l.b16 %v419
    %v1555 = vunpack.c.h.b16 %v419
    %v1556 = vunpack.c.l.b16 %v420
    %v1557 = vunpack.c.h.b16 %v420
    %v1558 = vunpack.c.l.b16 %v421
    %v1559 = vunpack.c.h.b16 %v421
    %v1560 = vunpack.c.l.b16 %v422
    %v1561 = vunpack.c.h.b16 %v422
    %v1562 = vunpack.c.l.b16 %v423
    %v1563 = vunpack.c.h.b16 %v423
    %v1564 = vunpack.c.l.b16 %v424
    %v1565 = vunpack.c.h.b16 %v424
    %v1566 = vunpack.c.l.b16 %v425
    %v1567 = vunpack.c.h.b16 %v425
    %v1568 = vunpack.c.l.b16 %v426
    %v1569 = vunpack.c.h.b16 %v426
    %v1570 = vunpack.c.l.b16 %v427
    %v1571 = vunpack.c.h.b16 %v427
    %v1572 = vunpack.c.l.b16 %v428
    %v1573 = vunpack.c.h.b16 %v428
    %v1574 = vunpack.c.l.b16 %v429
    %v1575 = vunpack.c.h.b16 %v429
    %v1576 = vunpack.c.l.b16 %v430
    %v1577 = vunpack.c.h.b16 %v430
    %v1578 = vunpack.c.l.b16 %v431
    %v1579 = vunpack.c.h.b16 %v431
    %v1580 = vunpack.c.l.b16 %v432
    %v1581 = vunpack.c.h.b16 %v432
    %v1582 = vunpack.c.l.b16 %v433
    %v1583 = vunpack.c.h.b16 %v433
    %v1584 = vunpack.c.l.b16 %v434
    %v1585 = vunpack.c.h.b16 %v434
    %v1586 = vunpack.c.l.b16 %v435
    %v1587 = vunpack.c.h.b16 %v435
    %v1588 = vpack.c.b16 %v832, %v820
    %v1589 = vpack.c.b16 %v833, %v821
    %v1590 = vpack.c.b16 %v834, %v822
    %v1591 = vpack.c.b16 %v835, %v823
    %v1592 = vpack.c.b16 %v836, %v824
    %v1593 = vpack.c.b16 %v837, %v825
    %v1594 = vpack.c.b16 %v838, %v826
    %v1595 = vpack.c.b16 %v839, %v827
    %v1596 = vpack.c.b16 %v840, %v828
    %v1597 = vpack.c.b16 %v841, %v829
    %v1598 = vpack.c.b16 %v842, %v830
    %v1599 = vpack.c.b16 %v843, %v831
    %v1600 = vpack.c.b16 %v856, %v844
    %v1601 = vpack.c.b16 %v857, %v845
    %v1602 = vpack.c.b16 %v858, %v846
    %v1603 = vpack.c.b16 %v859, %v847
    %v1604 = vpack.c.b16 %v860, %v848
    %v1605 = vpack.c.b16 %v861, %v849
    %v1606 = vpack.c.b16 %v862, %v850
    %v1607 = vpack.c.b16 %v863, %v851
    %v1608 = vpack.c.b16 %v864, %v852
    %v1609 = vpack.c.b16 %v865, %v853
    %v1610 = vpack.c.b16 %v866, %v854
    %v1611 = vpack.c.b16 %v867, %v855
    %v1612 = vpack.c.b16 %v880, %v868
    %v1613 = vpack.c.b16 %v881, %v869
    %v1614 = vpack.c.b16 %v882, %v870
    %v1615 = vpack.c.b16 %v883, %v871
    %v1616 = vpack.c.b16 %v884, %v872
    %v1617 = vpack.c.b16 %v885, %v873
    %v1618 = vpack.c.b16 %v886, %v874
    %v1619 = vpack.c.b16 %v887, %v875
    %v1620 = vpack.c.b16 %v888, %v876
    %v1621 = vpack.c.b16 %v889, %v877
    %v1622 = vpack.c.b16 %v890, %v878
    %v1623 = vpack.c.b16 %v891, %v879
    %v1624 = vpack.c.b16 %v904, %v892
    %v1625 = vpack.c.b16 %v905, %v893
    %v1626 = vpack.c.b16 %v906, %v894
    %v1627 = vpack.c.b16 %v907, %v895
    %v1628 = vpack.c.b16 %v908, %v896
    %v1629 = vpack.c.b16 %v909, %v897
    %v1630 = vpack.c.b16 %v910, %v898
    %v1631 = vpack.c.b16 %v911, %v899
    %v1632 = vpack.c.b16 %v912, %v900
    %v1633 = vpack.c.b16 %v913, %v901
    %v1634 = vpack.c.b16 %v914, %v902
    %v1635 = vpack.c.b16 %v915, %v903
    %v1636 = vpack.c.b16 %v928, %v916
    %v1637 = vpack.c.b16 %v929, %v917
    %v1638 = vpack.c.b16 %v930, %v918
    %v1639 = vpack.c.b16 %v931, %v919
    %v1640 = vpack.c.b16 %v932, %v920
    %v1641 = vpack.c.b16 %v933, %v921
    %v1642 = vpack.c.b16 %v934, %v922
    %v1643 = vpack.c.b16 %v935, %v923
    %v1644 = vpack.c.b16 %v936, %v924
    %v1645 = vpack.c.b16 %v937, %v925
    %v1646 = vpack.c.b16 %v938, %v926
    %v1647 = vpack.c.b16 %v939, %v927
    %v1648 = vpack.c.b16 %v952, %v940
    %v1649 = vpack.c.b16 %v953, %v941
    %v1650 = vpack.c.b16 %v954, %v942
    %v1651 = vpack.c.b16 %v955, %v943
    %v1652 = vpack.c.b16 %v956, %v944
    %v1653 = vpack.c.b16 %v957, %v945
    %v1654 = vpack.c.b16 %v958, %v946
    %v1655 = vpack.c.b16 %v959, %v947
    %v1656 = vpack.c.b16 %v960, %v948
    %v1657 = vpack.c.b16 %v961, %v949
    %v1658 = vpack.c.b16 %v962, %v950
    %v1659 = vpack.c.b16 %v963, %v951
    %v1660 = vpack.c.b16 %v976, %v964
    %v1661 = vpack.c.b16 %v977, %v965
    %v1662 = vpack.c.b16 %v978, %v966
    %v1663 = vpack.c.b16 %v979, %v967
    %v1664 = vpack.c.b16 %v980, %v968
    %v1665 = vpack.c.b16 %v981, %v969
    %v1666 = vpack.c.b16 %v982, %v970
    %v1667 = vpack.c.b16 %v983, %v971
    %v1668 = vpack.c.b16 %v984, %v972
    %v1669 = vpack.c.b16 %v985, %v973
    %v1670 = vpack.c.b16 %v986, %v974
    %v1671 = vpack.c.b16 %v987, %v975
    %v1672 = vpack.c.b16 %v1000, %v988
    %v1673 = vpack.c.b16 %v1001, %v989
    %v1674 = vpack.c.b16 %v1002, %v990
    %v1675 = vpack.c.b16 %v1003, %v991
    %v1676 = vpack.c.b16 %v1004, %v992
    %v1677 = vpack.c.b16 %v1005, %v993
    %v1678 = vpack.c.b16 %v1006, %v994
    %v1679 = vpack.c.b16 %v1007, %v995
    %v1680 = vpack.c.b16 %v1008, %v996
    %v1681 = vpack.c.b16 %v1009, %v997
    %v1682 = vpack.c.b16 %v1010, %v998
    %v1683 = vpack.c.b16 %v1011, %v999
    %v1684 = vpack.c.b16 %v1024, %v1012
    %v1685 = vpack.c.b16 %v1025, %v1013
    %v1686 = vpack.c.b16 %v1026, %v1014
    %v1687 = vpack.c.b16 %v1027, %v1015
    %v1688 = vpack.c.b16 %v1028, %v1016
    %v1689 = vpack.c.b16 %v1029, %v1017
    %v1690 = vpack.c.b16 %v1030, %v1018
    %v1691 = vpack.c.b16 %v1031, %v1019
    %v1692 = vpack.c.b16 %v1032, %v1020
    %v1693 = vpack.c.b16 %v1033, %v1021
    %v1694 = vpack.c.b16 %v1034, %v1022
    %v1695 = vpack.c.b16 %v1035, %v1023
    %v1696 = vpack.c.b16 %v1048, %v1036
    %v1697 = vpack.c.b16 %v1049, %v1037
    %v1698 = vpack.c.b16 %v1050, %v1038
    %v1699 = vpack.c.b16 %v1051, %v1039
    %v1700 = vpack.c.b16 %v1052, %v1040
    %v1701 = vpack.c.b16 %v1053, %v1041
    %v1702 = vpack.c.b16 %v1054, %v1042
    %v1703 = vpack.c.b16 %v1055, %v1043
    %v1704 = vpack.c.b16 %v1056, %v1044
    %v1705 = vpack.c.b16 %v1057, %v1045
    %v1706 = vpack.c.b16 %v1058, %v1046
    %v1707 = vpack.c.b16 %v1059, %v1047
    %v1708 = vpack.c.b16 %v1072, %v1060
    %v1709 = vpack.c.b16 %v1073, %v1061
    %v1710 = vpack.c.b16 %v1074, %v1062
    %v1711 = vpack.c.b16 %v1075, %v1063
    %v1712 = vpack.c.b16 %v1076, %v1064
    %v1713 = vpack.c.b16 %v1077, %v1065
    %v1714 = vpack.c.b16 %v1078, %v1066
    %v1715 = vpack.c.b16 %v1079, %v1067
    %v1716 = vpack.c.b16 %v1080, %v1068
    %v1717 = vpack.c.b16 %v1081, %v1069
    %v1718 = vpack.c.b16 %v1082, %v1070
    %v1719 = vpack.c.b16 %v1083, %v1071
    %v1720 = vpack.c.b16 %v1096, %v1084
    %v1721 = vpack.c.b16 %v1097, %v1085
    %v1722 = vpack.c.b16 %v1098, %v1086
    %v1723 = vpack.c.b16 %v1099, %v1087
    %v1724 = vpack.c.b16 %v1100, %v1088
    %v1725 = vpack.c.b16 %v1101, %v1089
    %v1726 = vpack.c.b16 %v1102, %v1090
    %v1727 = vpack.c.b16 %v1103, %v1091
    %v1728 = vpack.c.b16 %v1104, %v1092
    %v1729 = vpack.c.b16 %v1105, %v1093
    %v1730 = vpack.c.b16 %v1106, %v1094
    %v1731 = vpack.c.b16 %v1107, %v1095
    %v1732 = vpack.c.b16 %v1120, %v1108
    %v1733 = vpack.c.b16 %v1121, %v1109
    %v1734 = vpack.c.b16 %v1122, %v1110
    %v1735 = vpack.c.b16 %v1123, %v1111
    %v1736 = vpack.c.b16 %v1124, %v1112
    %v1737 = vpack.c.b16 %v1125, %v1113
    %v1738 = vpack.c.b16 %v1126, %v1114
    %v1739 = vpack.c.b16 %v1127, %v1115
    %v1740 = vpack.c.b16 %v1128, %v1116
    %v1741 = vpack.c.b16 %v1129, %v1117
    %v1742 = vpack.c.b16 %v1130, %v1118
    %v1743 = vpack.c.b16 %v1131, %v1119
    %v1744 = vpack.c.b16 %v1144, %v1132
    %v1745 = vpack.c.b16 %v1145, %v1133
    %v1746 = vpack.c.b16 %v1146, %v1134
    %v1747 = vpack.c.b16 %v1147, %v1135
    %v1748 = vpack.c.b16 %v1148, %v1136
    %v1749 = vpack.c.b16 %v1149, %v1137
    %v1750 = vpack.c.b16 %v1150, %v1138
    %v1751 = vpack.c.b16 %v1151, %v1139
    %v1752 = vpack.c.b16 %v1152, %v1140
    %v1753 = vpack.c.b16 %v1153, %v1141
    %v1754 = vpack.c.b16 %v1154, %v1142
    %v1755 = vpack.c.b16 %v1155, %v1143
    %v1756 = vpack.c.b16 %v1168, %v1156
    %v1757 = vpack.c.b16 %v1169, %v1157
    %v1758 = vpack.c.b16 %v1170, %v1158
    %v1759 = vpack.c.b16 %v1171, %v1159
    %v1760 = vpack.c.b16 %v1172, %v1160
    %v1761 = vpack.c.b16 %v1173, %v1161
    %v1762 = vpack.c.b16 %v1174, %v1162
    %v1763 = vpack.c.b16 %v1175, %v1163
    %v1764 = vpack.c.b16 %v1176, %v1164
    %v1765 = vpack.c.b16 %v1177, %v1165
    %v1766 = vpack.c.b16 %v1178, %v1166
    %v1767 = vpack.c.b16 %v1179, %v1167
    %v1768 = vpack.c.b16 %v1192, %v1180
    %v1769 = vpack.c.b16 %v1193, %v1181
    %v1770 = vpack.c.b16 %v1194, %v1182
    %v1771 = vpack.c.b16 %v1195, %v1183
    %v1772 = vpack.c.b16 %v1196, %v1184
    %v1773 = vpack.c.b16 %v1197, %v1185
    %v1774 = vpack.c.b16 %v1198, %v1186
    %v1775 = vpack.c.b16 %v1199, %v1187
    %v1776 = vpack.c.b16 %v1200, %v1188
    %v1777 = vpack.c.b16 %v1201, %v1189
    %v1778 = vpack.c.b16 %v1202, %v1190
    %v1779 = vpack.c.b16 %v1203, %v1191
    %v1780 = vpack.c.b16 %v1216, %v1204
    %v1781 = vpack.c.b16 %v1217, %v1205
    %v1782 = vpack.c.b16 %v1218, %v1206
    %v1783 = vpack.c.b16 %v1219, %v1207
    %v1784 = vpack.c.b16 %v1220, %v1208
    %v1785 = vpack.c.b16 %v1221, %v1209
    %v1786 = vpack.c.b16 %v1222, %v1210
    %v1787 = vpack.c.b16 %v1223, %v1211
    %v1788 = vpack.c.b16 %v1224, %v1212
    %v1789 = vpack.c.b16 %v1225, %v1213
    %v1790 = vpack.c.b16 %v1226, %v1214
    %v1791 = vpack.c.b16 %v1227, %v1215
    %v1792 = vpack.c.b16 %v1240, %v1228
    %v1793 = vpack.c.b16 %v1241, %v1229
    %v1794 = vpack.c.b16 %v1242, %v1230
    %v1795 = vpack.c.b16 %v1243, %v1231
    %v1796 = vpack.c.b16 %v1244, %v1232
    %v1797 = vpack.c.b16 %v1245, %v1233
    %v1798 = vpack.c.b16 %v1246, %v1234
    %v1799 = vpack.c.b16 %v1247, %v1235
    %v1800 = vpack.c.b16 %v1248, %v1236
    %v1801 = vpack.c.b16 %v1249, %v1237
    %v1802 = vpack.c.b16 %v1250, %v1238
    %v1803 = vpack.c.b16 %v1251, %v1239
    %v1804 = vpack.c.b16 %v1264, %v1252
    %v1805 = vpack.c.b16 %v1265, %v1253
    %v1806 = vpack.c.b16 %v1266, %v1254
    %v1807 = vpack.c.b16 %v1267, %v1255
    %v1808 = vpack.c.b16 %v1268, %v1256
    %v1809 = vpack.c.b16 %v1269, %v1257
    %v1810 = vpack.c.b16 %v1270, %v1258
    %v1811 = vpack.c.b16 %v1271, %v1259
    %v1812 = vpack.c.b16 %v1272, %v1260
    %v1813 = vpack.c.b16 %v1273, %v1261
    %v1814 = vpack.c.b16 %v1274, %v1262
    %v1815 = vpack.c.b16 %v1275, %v1263
    %v1816 = vpack.c.b16 %v1288, %v1276
    %v1817 = vpack.c.b16 %v1289, %v1277
    %v1818 = vpack.c.b16 %v1290, %v1278
    %v1819 = vpack.c.b16 %v1291, %v1279
    %v1820 = vpack.c.b16 %v1292, %v1280
    %v1821 = vpack.c.b16 %v1293, %v1281
    %v1822 = vpack.c.b16 %v1294, %v1282
    %v1823 = vpack.c.b16 %v1295, %v1283
    %v1824 = vpack.c.b16 %v1296, %v1284
    %v1825 = vpack.c.b16 %v1297, %v1285
    %v1826 = vpack.c.b16 %v1298, %v1286
    %v1827 = vpack.c.b16 %v1299, %v1287
    %v1828 = vpack.c.b16 %v1312, %v1300
    %v1829 = vpack.c.b16 %v1313, %v1301
    %v1830 = vpack.c.b16 %v1314, %v1302
    %v1831 = vpack.c.b16 %v1315, %v1303
    %v1832 = vpack.c.b16 %v1316, %v1304
    %v1833 = vpack.c.b16 %v1317, %v1305
    %v1834 = vpack.c.b16 %v1318, %v1306
    %v1835 = vpack.c.b16 %v1319, %v1307
    %v1836 = vpack.c.b16 %v1320, %v1308
    %v1837 = vpack.c.b16 %v1321, %v1309
    %v1838 = vpack.c.b16 %v1322, %v1310
    %v1839 = vpack.c.b16 %v1323, %v1311
    %v1840 = vpack.c.b16 %v1336, %v1324
    %v1841 = vpack.c.b16 %v1337, %v1325
    %v1842 = vpack.c.b16 %v1338, %v1326
    %v1843 = vpack.c.b16 %v1339, %v1327
    %v1844 = vpack.c.b16 %v1340, %v1328
    %v1845 = vpack.c.b16 %v1341, %v1329
    %v1846 = vpack.c.b16 %v1342, %v1330
    %v1847 = vpack.c.b16 %v1343, %v1331
    %v1848 = vpack.c.b16 %v1344, %v1332
    %v1849 = vpack.c.b16 %v1345, %v1333
    %v1850 = vpack.c.b16 %v1346, %v1334
    %v1851 = vpack.c.b16 %v1347, %v1335
    %v1852 = vpack.c.b16 %v1360, %v1348
    %v1853 = vpack.c.b16 %v1361, %v1349
    %v1854 = vpack.c.b16 %v1362, %v1350
    %v1855 = vpack.c.b16 %v1363, %v1351
    %v1856 = vpack.c.b16 %v1364, %v1352
    %v1857 = vpack.c.b16 %v1365, %v1353
    %v1858 = vpack.c.b16 %v1366, %v1354
    %v1859 = vpack.c.b16 %v1367, %v1355
    %v1860 = vpack.c.b16 %v1368, %v1356
    %v1861 = vpack.c.b16 %v1369, %v1357
    %v1862 = vpack.c.b16 %v1370, %v1358
    %v1863 = vpack.c.b16 %v1371, %v1359
    %v1864 = vpack.c.b16 %v1384, %v1372
    %v1865 = vpack.c.b16 %v1385, %v1373
    %v1866 = vpack.c.b16 %v1386, %v1374
    %v1867 = vpack.c.b16 %v1387, %v1375
    %v1868 = vpack.c.b16 %v1388, %v1376
    %v1869 = vpack.c.b16 %v1389, %v1377
    %v1870 = vpack.c.b16 %v1390, %v1378
    %v1871 = vpack.c.b16 %v1391, %v1379
    %v1872 = vpack.c.b16 %v1392, %v1380
    %v1873 = vpack.c.b16 %v1393, %v1381
    %v1874 = vpack.c.b16 %v1394, %v1382
    %v1875 = vpack.c.b16 %v1395, %v1383
    %v1876 = vpack.c.b16 %v1408, %v1396
    %v1877 = vpack.c.b16 %v1409, %v1397
    %v1878 = vpack.c.b16 %v1410, %v1398
    %v1879 = vpack.c.b16 %v1411, %v1399
    %v1880 = vpack.c.b16 %v1412, %v1400
    %v1881 = vpack.c.b16 %v1413, %v1401
    %v1882 = vpack.c.b16 %v1414, %v1402
    %v1883 = vpack.c.b16 %v1415, %v1403
    %v1884 = vpack.c.b16 %v1416, %v1404
    %v1885 = vpack.c.b16 %v1417, %v1405
    %v1886 = vpack.c.b16 %v1418, %v1406
    %v1887 = vpack.c.b16 %v1419, %v1407
    %v1888 = vpack.c.b16 %v1432, %v1420
    %v1889 = vpack.c.b16 %v1433, %v1421
    %v1890 = vpack.c.b16 %v1434, %v1422
    %v1891 = vpack.c.b16 %v1435, %v1423
    %v1892 = vpack.c.b16 %v1436, %v1424
    %v1893 = vpack.c.b16 %v1437, %v1425
    %v1894 = vpack.c.b16 %v1438, %v1426
    %v1895 = vpack.c.b16 %v1439, %v1427
    %v1896 = vpack.c.b16 %v1440, %v1428
    %v1897 = vpack.c.b16 %v1441, %v1429
    %v1898 = vpack.c.b16 %v1442, %v1430
    %v1899 = vpack.c.b16 %v1443, %v1431
    %v1900 = vpack.c.b16 %v1456, %v1444
    %v1901 = vpack.c.b16 %v1457, %v1445
    %v1902 = vpack.c.b16 %v1458, %v1446
    %v1903 = vpack.c.b16 %v1459, %v1447
    %v1904 = vpack.c.b16 %v1460, %v1448
    %v1905 = vpack.c.b16 %v1461, %v1449
    %v1906 = vpack.c.b16 %v1462, %v1450
    %v1907 = vpack.c.b16 %v1463, %v1451
    %v1908 = vpack.c.b16 %v1464, %v1452
    %v1909 = vpack.c.b16 %v1465, %v1453
    %v1910 = vpack.c.b16 %v1466, %v1454
    %v1911 = vpack.c.b16 %v1467, %v1455
    %v1912 = vpack.c.b16 %v1480, %v1468
    %v1913 = vpack.c.b16 %v1481, %v1469
    %v1914 = vpack.c.b16 %v1482, %v1470
    %v1915 = vpack.c.b16 %v1483, %v1471
    %v1916 = vpack.c.b16 %v1484, %v1472
    %v1917 = vpack.c.b16 %v1485, %v1473
    %v1918 = vpack.c.b16 %v1486, %v1474
    %v1919 = vpack.c.b16 %v1487, %v1475
    %v1920 = vpack.c.b16 %v1488, %v1476
    %v1921 = vpack.c.b16 %v1489, %v1477
    %v1922 = vpack.c.b16 %v1490, %v1478
    %v1923 = vpack.c.b16 %v1491, %v1479
    %v1924 = vpack.c.b16 %v1504, %v1492
    %v1925 = vpack.c.b16 %v1505, %v1493
    %v1926 = vpack.c.b16 %v1506, %v1494
    %v1927 = vpack.c.b16 %v1507, %v1495
    %v1928 = vpack.c.b16 %v1508, %v1496
    %v1929 = vpack.c.b16 %v1509, %v1497
    %v1930 = vpack.c.b16 %v1510, %v1498
    %v1931 = vpack.c.b16 %v1511, %v1499
    %v1932 = vpack.c.b16 %v1512, %v1500
    %v1933 = vpack.c.b16 %v1513, %v1501
    %v1934 = vpack.c.b16 %v1514, %v1502
    %v1935 = vpack.c.b16 %v1515, %v1503
    %v1936 = vpack.c.b16 %v1528, %v1516
    %v1937 = vpack.c.b16 %v1529, %v1517
    %v1938 = vpack.c.b16 %v1530, %v1518
    %v1939 = vpack.c.b16 %v1531, %v1519
    %v1940 = vpack.c.b16 %v1532, %v1520
    %v1941 = vpack.c.b16 %v1533, %v1521
    %v1942 = vpack.c.b16 %v1534, %v1522
    %v1943 = vpack.c.b16 %v1535, %v1523
    %v1944 = vpack.c.b16 %v1536, %v1524
    %v1945 = vpack.c.b16 %v1537, %v1525
    %v1946 = vpack.c.b16 %v1538, %v1526
    %v1947 = vpack.c.b16 %v1539, %v1527
    %v1948 = vpack.c.b16 %v1552, %v1540
    %v1949 = vpack.c.b16 %v1553, %v1541
    %v1950 = vpack.c.b16 %v1554, %v1542
    %v1951 = vpack.c.b16 %v1555, %v1543
    %v1952 = vpack.c.b16 %v1556, %v1544
    %v1953 = vpack.c.b16 %v1557, %v1545
    %v1954 = vpack.c.b16 %v1558, %v1546
    %v1955 = vpack.c.b16 %v1559, %v1547
    %v1956 = vpack.c.b16 %v1560, %v1548
    %v1957 = vpack.c.b16 %v1561, %v1549
    %v1958 = vpack.c.b16 %v1562, %v1550
    %v1959 = vpack.c.b16 %v1563, %v1551
    %v1960 = vpack.c.b16 %v1576, %v1564
    %v1961 = vpack.c.b16 %v1577, %v1565
    %v1962 = vpack.c.b16 %v1578, %v1566
    %v1963 = vpack.c.b16 %v1579, %v1567
    %v1964 = vpack.c.b16 %v1580, %v1568
    %v1965 = vpack.c.b16 %v1581, %v1569
    %v1966 = vpack.c.b16 %v1582, %v1570
    %v1967 = vpack.c.b16 %v1583, %v1571
    %v1968 = vpack.c.b16 %v1584, %v1572
    %v1969 = vpack.c.b16 %v1585, %v1573
    %v1970 = vpack.c.b16 %v1586, %v1574
    %v1971 = vpack.c.b16 %v1587, %v1575
    %2356 = vmatprep.subr.bf16.mxu0 %v1589
    %2357 = vmatpush1.bf16.msra.mxu0 %v1588
    %2358 = vmatprep.subr.bf16.mxu0 %v1601
    %2359 = vmatpush1.bf16.msra.mxu0 %v1600
    %2360 = vmatprep.subr.bf16.mxu0 %v1613
    %2361 = vmatpush1.bf16.msra.mxu0 %v1612
    %2362 = vmatprep.subr.bf16.mxu0 %v1625
    %2363 = vmatpush1.bf16.msra.mxu0 %v1624
    %2364 = vmatprep.subr.bf16.mxu0 %v1637
    %2365 = vmatpush1.bf16.msra.mxu0 %v1636
    %2366 = vmatprep.subr.bf16.mxu0 %v1649
    %2367 = vmatpush1.bf16.msra.mxu0 %v1648
    %2368 = vmatprep.subr.bf16.mxu0 %v1661
    %2369 = vmatpush1.bf16.msra.mxu0 %v1660
    %2370 = vmatprep.subr.bf16.mxu0 %v1673
    %2371 = vmatpush1.bf16.msra.mxu0 %v1672
    %2372 = vmatprep.subr.bf16.mxu0 %v1685
    %2373 = vmatpush1.bf16.msra.mxu0 %v1684
    %2374 = vmatprep.subr.bf16.mxu0 %v1697
    %2375 = vmatpush1.bf16.msra.mxu0 %v1696
    %2376 = vmatprep.subr.bf16.mxu0 %v1709
    %2377 = vmatpush1.bf16.msra.mxu0 %v1708
    %2378 = vmatprep.subr.bf16.mxu0 %v1721
    %2379 = vmatpush1.bf16.msra.mxu0 %v1720
    %2380 = vmatprep.subr.bf16.mxu0 %v1733
    %2381 = vmatpush1.bf16.msra.mxu0 %v1732
    %2382 = vmatprep.subr.bf16.mxu0 %v1745
    %2383 = vmatpush1.bf16.msra.mxu0 %v1744
    %2384 = vmatprep.subr.bf16.mxu0 %v1757
    %2385 = vmatpush1.bf16.msra.mxu0 %v1756
    %2386 = vmatprep.subr.bf16.mxu0 %v1769
    %2387 = vmatpush1.bf16.msra.mxu0 %v1768
    %2388 = vmatprep.mubr.bf16.mxu0 %v49
    %2389 = vmatmul.mubr.bf16.gmra.mrb[0].mxu0 %v48
    %v2390 = vpop.f32.mrb[0].mxu0
    %v2391 = vadd.f32 0.0, %v2390
    %v2392 = vpop.f32.mrb[0].mxu0
    %v2393 = vadd.f32 0.0, %v2392
    %v2394 = vpop.f32.mrb[0].mxu0
    %v2395 = vadd.f32 0.0, %v2394
    %v2396 = vpop.f32.mrb[0].mxu0
    %v2397 = vadd.f32 0.0, %v2396
    %2398 = vdwg.mxu0
    %2399 = vmatprep.subr.bf16.mxu0 %v1781
    %2400 = vmatpush1.bf16.msra.mxu0 %v1780
    %2401 = vmatprep.subr.bf16.mxu0 %v1793
    %2402 = vmatpush1.bf16.msra.mxu0 %v1792
    %2403 = vmatprep.subr.bf16.mxu0 %v1805
    %2404 = vmatpush1.bf16.msra.mxu0 %v1804
    %2405 = vmatprep.subr.bf16.mxu0 %v1817
    %2406 = vmatpush1.bf16.msra.mxu0 %v1816
    %2407 = vmatprep.subr.bf16.mxu0 %v1829
    %2408 = vmatpush1.bf16.msra.mxu0 %v1828
    %2409 = vmatprep.subr.bf16.mxu0 %v1841
    %2410 = vmatpush1.bf16.msra.mxu0 %v1840
    %2411 = vmatprep.subr.bf16.mxu0 %v1853
    %2412 = vmatpush1.bf16.msra.mxu0 %v1852
    %2413 = vmatprep.subr.bf16.mxu0 %v1865
    %2414 = vmatpush1.bf16.msra.mxu0 %v1864
    %2415 = vmatprep.subr.bf16.mxu0 %v1877
    %2416 = vmatpush1.bf16.msra.mxu0 %v1876
    %2417 = vmatprep.subr.bf16.mxu0 %v1889
    %2418 = vmatpush1.bf16.msra.mxu0 %v1888
    %2419 = vmatprep.subr.bf16.mxu0 %v1901
    %2420 = vmatpush1.bf16.msra.mxu0 %v1900
    %2421 = vmatprep.subr.bf16.mxu0 %v1913
    %2422 = vmatpush1.bf16.msra.mxu0 %v1912
    %2423 = vmatprep.subr.bf16.mxu0 %v1925
    %2424 = vmatpush1.bf16.msra.mxu0 %v1924
    %2425 = vmatprep.subr.bf16.mxu0 %v1937
    %2426 = vmatpush1.bf16.msra.mxu0 %v1936
    %2427 = vmatprep.subr.bf16.mxu0 %v1949
    %2428 = vmatpush1.bf16.msra.mxu0 %v1948
    %2429 = vmatprep.subr.bf16.mxu0 %v1961
    %2430 = vmatpush1.bf16.msra.mxu0 %v1960
    %2431 = vmatprep.mubr.bf16.mxu0 %v51
    %2432 = vmatmul.mubr.bf16.gmra.mrb[0].mxu0 %v50
    %v2433 = vpop.f32.mrb[0].mxu0
    %v2434 = vadd.f32 %v2391, %v2433
    %v2435 = vpop.f32.mrb[0].mxu0
    %v2436 = vadd.f32 %v2393, %v2435
    %v2437 = vpop.f32.mrb[0].mxu0
    %v2438 = vadd.f32 %v2395, %v2437
    %v2439 = vpop.f32.mrb[0].mxu0
    %v2440 = vadd.f32 %v2397, %v2439
    %2441 = vdwg.mxu0
    %2442 = vmatprep.subr.bf16.mxu0 %v1591
    %2443 = vmatpush1.bf16.msra.mxu0 %v1590
    %2444 = vmatprep.subr.bf16.mxu0 %v1603
    %2445 = vmatpush1.bf16.msra.mxu0 %v1602
    %2446 = vmatprep.subr.bf16.mxu0 %v1615
    %2447 = vmatpush1.bf16.msra.mxu0 %v1614
    %2448 = vmatprep.subr.bf16.mxu0 %v1627
    %2449 = vmatpush1.bf16.msra.mxu0 %v1626
    %2450 = vmatprep.subr.bf16.mxu0 %v1639
    %2451 = vmatpush1.bf16.msra.mxu0 %v1638
    %2452 = vmatprep.subr.bf16.mxu0 %v1651
    %2453 = vmatpush1.bf16.msra.mxu0 %v1650
    %2454 = vmatprep.subr.bf16.mxu0 %v1663
    %2455 = vmatpush1.bf16.msra.mxu0 %v1662
    %2456 = vmatprep.subr.bf16.mxu0 %v1675
    %2457 = vmatpush1.bf16.msra.mxu0 %v1674
    %2458 = vmatprep.subr.bf16.mxu0 %v1687
    %2459 = vmatpush1.bf16.msra.mxu0 %v1686
    %2460 = vmatprep.subr.bf16.mxu0 %v1699
    %2461 = vmatpush1.bf16.msra.mxu0 %v1698
    %2462 = vmatprep.subr.bf16.mxu0 %v1711
    %2463 = vmatpush1.bf16.msra.mxu0 %v1710
    %2464 = vmatprep.subr.bf16.mxu0 %v1723
    %2465 = vmatpush1.bf16.msra.mxu0 %v1722
    %2466 = vmatprep.subr.bf16.mxu0 %v1735
    %2467 = vmatpush1.bf16.msra.mxu0 %v1734
    %2468 = vmatprep.subr.bf16.mxu0 %v1747
    %2469 = vmatpush1.bf16.msra.mxu0 %v1746
    %2470 = vmatprep.subr.bf16.mxu0 %v1759
    %2471 = vmatpush1.bf16.msra.mxu0 %v1758
    %2472 = vmatprep.subr.bf16.mxu0 %v1771
    %2473 = vmatpush1.bf16.msra.mxu0 %v1770
    %2474 = vmatprep.mubr.bf16.mxu0 %v49
    %2475 = vmatmul.mubr.bf16.gmra.mrb[0].mxu0 %v48
    %v2476 = vpop.f32.mrb[0].mxu0
    %v2477 = vadd.f32 0.0, %v2476
    %v2478 = vpop.f32.mrb[0].mxu0
    %v2479 = vadd.f32 0.0, %v2478
    %v2480 = vpop.f32.mrb[0].mxu0
    %v2481 = vadd.f32 0.0, %v2480
    %v2482 = vpop.f32.mrb[0].mxu0
    %v2483 = vadd.f32 0.0, %v2482
    %2484 = vdwg.mxu0
    %2485 = vmatprep.subr.bf16.mxu0 %v1783
    %2486 = vmatpush1.bf16.msra.mxu0 %v1782
    %2487 = vmatprep.subr.bf16.mxu0 %v1795
    %2488 = vmatpush1.bf16.msra.mxu0 %v1794
    %2489 = vmatprep.subr.bf16.mxu0 %v1807
    %2490 = vmatpush1.bf16.msra.mxu0 %v1806
    %2491 = vmatprep.subr.bf16.mxu0 %v1819
    %2492 = vmatpush1.bf16.msra.mxu0 %v1818
    %2493 = vmatprep.subr.bf16.mxu0 %v1831
    %2494 = vmatpush1.bf16.msra.mxu0 %v1830
    %2495 = vmatprep.subr.bf16.mxu0 %v1843
    %2496 = vmatpush1.bf16.msra.mxu0 %v1842
    %2497 = vmatprep.subr.bf16.mxu0 %v1855
    %2498 = vmatpush1.bf16.msra.mxu0 %v1854
    %2499 = vmatprep.subr.bf16.mxu0 %v1867
    %2500 = vmatpush1.bf16.msra.mxu0 %v1866
    %2501 = vmatprep.subr.bf16.mxu0 %v1879
    %2502 = vmatpush1.bf16.msra.mxu0 %v1878
    %2503 = vmatprep.subr.bf16.mxu0 %v1891
    %2504 = vmatpush1.bf16.msra.mxu0 %v1890
    %2505 = vmatprep.subr.bf16.mxu0 %v1903
    %2506 = vmatpush1.bf16.msra.mxu0 %v1902
    %2507 = vmatprep.subr.bf16.mxu0 %v1915
    %2508 = vmatpush1.bf16.msra.mxu0 %v1914
    %2509 = vmatprep.subr.bf16.mxu0 %v1927
    %2510 = vmatpush1.bf16.msra.mxu0 %v1926
    %2511 = vmatprep.subr.bf16.mxu0 %v1939
    %2512 = vmatpush1.bf16.msra.mxu0 %v1938
    %2513 = vmatprep.subr.bf16.mxu0 %v1951
    %2514 = vmatpush1.bf16.msra.mxu0 %v1950
    %2515 = vmatprep.subr.bf16.mxu0 %v1963
    %2516 = vmatpush1.bf16.msra.mxu0 %v1962
    %2517 = vmatprep.mubr.bf16.mxu0 %v51
    %2518 = vmatmul.mubr.bf16.gmra.mrb[0].mxu0 %v50
    %v2519 = vpop.f32.mrb[0].mxu0
    %v2520 = vadd.f32 %v2477, %v2519
    %v2521 = vpop.f32.mrb[0].mxu0
    %v2522 = vadd.f32 %v2479, %v2521
    %v2523 = vpop.f32.mrb[0].mxu0
    %v2524 = vadd.f32 %v2481, %v2523
    %v2525 = vpop.f32.mrb[0].mxu0
    %v2526 = vadd.f32 %v2483, %v2525
    %2527 = vdwg.mxu0
    %2528 = vmatprep.subr.bf16.mxu0 %v1593
    %2529 = vmatpush1.bf16.msra.mxu0 %v1592
    %2530 = vmatprep.subr.bf16.mxu0 %v1605
    %2531 = vmatpush1.bf16.msra.mxu0 %v1604
    %2532 = vmatprep.subr.bf16.mxu0 %v1617
    %2533 = vmatpush1.bf16.msra.mxu0 %v1616
    %2534 = vmatprep.subr.bf16.mxu0 %v1629
    %2535 = vmatpush1.bf16.msra.mxu0 %v1628
    %2536 = vmatprep.subr.bf16.mxu0 %v1641
    %2537 = vmatpush1.bf16.msra.mxu0 %v1640
    %2538 = vmatprep.subr.bf16.mxu0 %v1653
    %2539 = vmatpush1.bf16.msra.mxu0 %v1652
    %2540 = vmatprep.subr.bf16.mxu0 %v1665
    %2541 = vmatpush1.bf16.msra.mxu0 %v1664
    %2542 = vmatprep.subr.bf16.mxu0 %v1677
    %2543 = vmatpush1.bf16.msra.mxu0 %v1676
    %2544 = vmatprep.subr.bf16.mxu0 %v1689
    %2545 = vmatpush1.bf16.msra.mxu0 %v1688
    %2546 = vmatprep.subr.bf16.mxu0 %v1701
    %2547 = vmatpush1.bf16.msra.mxu0 %v1700
    %2548 = vmatprep.subr.bf16.mxu0 %v1713
    %2549 = vmatpush1.bf16.msra.mxu0 %v1712
    %2550 = vmatprep.subr.bf16.mxu0 %v1725
    %2551 = vmatpush1.bf16.msra.mxu0 %v1724
    %2552 = vmatprep.subr.bf16.mxu0 %v1737
    %2553 = vmatpush1.bf16.msra.mxu0 %v1736
    %2554 = vmatprep.subr.bf16.mxu0 %v1749
    %2555 = vmatpush1.bf16.msra.mxu0 %v1748
    %2556 = vmatprep.subr.bf16.mxu0 %v1761
    %2557 = vmatpush1.bf16.msra.mxu0 %v1760
    %2558 = vmatprep.subr.bf16.mxu0 %v1773
    %2559 = vmatpush1.bf16.msra.mxu0 %v1772
    %2560 = vmatprep.mubr.bf16.mxu0 %v49
    %2561 = vmatmul.mubr.bf16.gmra.mrb[0].mxu0 %v48
    %v2562 = vpop.f32.mrb[0].mxu0
    %v2563 = vadd.f32 0.0, %v2562
    %v2564 = vpop.f32.mrb[0].mxu0
    %v2565 = vadd.f32 0.0, %v2564
    %v2566 = vpop.f32.mrb[0].mxu0
    %v2567 = vadd.f32 0.0, %v2566
    %v2568 = vpop.f32.mrb[0].mxu0
    %v2569 = vadd.f32 0.0, %v2568
    %2570 = vdwg.mxu0
    %2571 = vmatprep.subr.bf16.mxu0 %v1785
    %2572 = vmatpush1.bf16.msra.mxu0 %v1784
    %2573 = vmatprep.subr.bf16.mxu0 %v1797
    %2574 = vmatpush1.bf16.msra.mxu0 %v1796
    %2575 = vmatprep.subr.bf16.mxu0 %v1809
    %2576 = vmatpush1.bf16.msra.mxu0 %v1808
    %2577 = vmatprep.subr.bf16.mxu0 %v1821
    %2578 = vmatpush1.bf16.msra.mxu0 %v1820
    %2579 = vmatprep.subr.bf16.mxu0 %v1833
    %2580 = vmatpush1.bf16.msra.mxu0 %v1832
    %2581 = vmatprep.subr.bf16.mxu0 %v1845
    %2582 = vmatpush1.bf16.msra.mxu0 %v1844
    %2583 = vmatprep.subr.bf16.mxu0 %v1857
    %2584 = vmatpush1.bf16.msra.mxu0 %v1856
    %2585 = vmatprep.subr.bf16.mxu0 %v1869
    %2586 = vmatpush1.bf16.msra.mxu0 %v1868
    %2587 = vmatprep.subr.bf16.mxu0 %v1881
    %2588 = vmatpush1.bf16.msra.mxu0 %v1880
    %2589 = vmatprep.subr.bf16.mxu0 %v1893
    %2590 = vmatpush1.bf16.msra.mxu0 %v1892
    %2591 = vmatprep.subr.bf16.mxu0 %v1905
    %2592 = vmatpush1.bf16.msra.mxu0 %v1904
    %2593 = vmatprep.subr.bf16.mxu0 %v1917
    %2594 = vmatpush1.bf16.msra.mxu0 %v1916
    %2595 = vmatprep.subr.bf16.mxu0 %v1929
    %2596 = vmatpush1.bf16.msra.mxu0 %v1928
    %2597 = vmatprep.subr.bf16.mxu0 %v1941
    %2598 = vmatpush1.bf16.msra.mxu0 %v1940
    %2599 = vmatprep.subr.bf16.mxu0 %v1953
    %2600 = vmatpush1.bf16.msra.mxu0 %v1952
    %2601 = vmatprep.subr.bf16.mxu0 %v1965
    %2602 = vmatpush1.bf16.msra.mxu0 %v1964
    %2603 = vmatprep.mubr.bf16.mxu0 %v51
    %2604 = vmatmul.mubr.bf16.gmra.mrb[0].mxu0 %v50
    %v2605 = vpop.f32.mrb[0].mxu0
    %v2606 = vadd.f32 %v2563, %v2605
    %v2607 = vpop.f32.mrb[0].mxu0
    %v2608 = vadd.f32 %v2565, %v2607
    %v2609 = vpop.f32.mrb[0].mxu0
    %v2610 = vadd.f32 %v2567, %v2609
    %v2611 = vpop.f32.mrb[0].mxu0
    %v2612 = vadd.f32 %v2569, %v2611
    %2613 = vdwg.mxu0
    %2614 = vmatprep.subr.bf16.mxu0 %v1595
    %2615 = vmatpush1.bf16.msra.mxu0 %v1594
    %2616 = vmatprep.subr.bf16.mxu0 %v1607
    %2617 = vmatpush1.bf16.msra.mxu0 %v1606
    %2618 = vmatprep.subr.bf16.mxu0 %v1619
    %2619 = vmatpush1.bf16.msra.mxu0 %v1618
    %2620 = vmatprep.subr.bf16.mxu0 %v1631
    %2621 = vmatpush1.bf16.msra.mxu0 %v1630
    %2622 = vmatprep.subr.bf16.mxu0 %v1643
    %2623 = vmatpush1.bf16.msra.mxu0 %v1642
    %2624 = vmatprep.subr.bf16.mxu0 %v1655
    %2625 = vmatpush1.bf16.msra.mxu0 %v1654
    %2626 = vmatprep.subr.bf16.mxu0 %v1667
    %2627 = vmatpush1.bf16.msra.mxu0 %v1666
    %2628 = vmatprep.subr.bf16.mxu0 %v1679
    %2629 = vmatpush1.bf16.msra.mxu0 %v1678
    %2630 = vmatprep.subr.bf16.mxu0 %v1691
    %2631 = vmatpush1.bf16.msra.mxu0 %v1690
    %2632 = vmatprep.subr.bf16.mxu0 %v1703
    %2633 = vmatpush1.bf16.msra.mxu0 %v1702
    %2634 = vmatprep.subr.bf16.mxu0 %v1715
    %2635 = vmatpush1.bf16.msra.mxu0 %v1714
    %2636 = vmatprep.subr.bf16.mxu0 %v1727
    %2637 = vmatpush1.bf16.msra.mxu0 %v1726
    %2638 = vmatprep.subr.bf16.mxu0 %v1739
    %2639 = vmatpush1.bf16.msra.mxu0 %v1738
    %2640 = vmatprep.subr.bf16.mxu0 %v1751
    %2641 = vmatpush1.bf16.msra.mxu0 %v1750
    %2642 = vmatprep.subr.bf16.mxu0 %v1763
    %2643 = vmatpush1.bf16.msra.mxu0 %v1762
    %2644 = vmatprep.subr.bf16.mxu0 %v1775
    %2645 = vmatpush1.bf16.msra.mxu0 %v1774
    %2646 = vmatprep.mubr.bf16.mxu0 %v49
    %2647 = vmatmul.mubr.bf16.gmra.mrb[0].mxu0 %v48
    %v2648 = vpop.f32.mrb[0].mxu0
    %v2649 = vadd.f32 0.0, %v2648
    %v2650 = vpop.f32.mrb[0].mxu0
    %v2651 = vadd.f32 0.0, %v2650
    %v2652 = vpop.f32.mrb[0].mxu0
    %v2653 = vadd.f32 0.0, %v2652
    %v2654 = vpop.f32.mrb[0].mxu0
    %v2655 = vadd.f32 0.0, %v2654
    %2656 = vdwg.mxu0
    %2657 = vmatprep.subr.bf16.mxu0 %v1787
    %2658 = vmatpush1.bf16.msra.mxu0 %v1786
    %2659 = vmatprep.subr.bf16.mxu0 %v1799
    %2660 = vmatpush1.bf16.msra.mxu0 %v1798
    %2661 = vmatprep.subr.bf16.mxu0 %v1811
    %2662 = vmatpush1.bf16.msra.mxu0 %v1810
    %2663 = vmatprep.subr.bf16.mxu0 %v1823
    %2664 = vmatpush1.bf16.msra.mxu0 %v1822
    %2665 = vmatprep.subr.bf16.mxu0 %v1835
    %2666 = vmatpush1.bf16.msra.mxu0 %v1834
    %2667 = vmatprep.subr.bf16.mxu0 %v1847
    %2668 = vmatpush1.bf16.msra.mxu0 %v1846
    %2669 = vmatprep.subr.bf16.mxu0 %v1859
    %2670 = vmatpush1.bf16.msra.mxu0 %v1858
    %2671 = vmatprep.subr.bf16.mxu0 %v1871
    %2672 = vmatpush1.bf16.msra.mxu0 %v1870
    %2673 = vmatprep.subr.bf16.mxu0 %v1883
    %2674 = vmatpush1.bf16.msra.mxu0 %v1882
    %2675 = vmatprep.subr.bf16.mxu0 %v1895
    %2676 = vmatpush1.bf16.msra.mxu0 %v1894
    %2677 = vmatprep.subr.bf16.mxu0 %v1907
    %2678 = vmatpush1.bf16.msra.mxu0 %v1906
    %2679 = vmatprep.subr.bf16.mxu0 %v1919
    %2680 = vmatpush1.bf16.msra.mxu0 %v1918
    %2681 = vmatprep.subr.bf16.mxu0 %v1931
    %2682 = vmatpush1.bf16.msra.mxu0 %v1930
    %2683 = vmatprep.subr.bf16.mxu0 %v1943
    %2684 = vmatpush1.bf16.msra.mxu0 %v1942
    %2685 = vmatprep.subr.bf16.mxu0 %v1955
    %2686 = vmatpush1.bf16.msra.mxu0 %v1954
    %2687 = vmatprep.subr.bf16.mxu0 %v1967
    %2688 = vmatpush1.bf16.msra.mxu0 %v1966
    %2689 = vmatprep.mubr.bf16.mxu0 %v51
    %2690 = vmatmul.mubr.bf16.gmra.mrb[0].mxu0 %v50
    %v2691 = vpop.f32.mrb[0].mxu0
    %v2692 = vadd.f32 %v2649, %v2691
    %v2693 = vpop.f32.mrb[0].mxu0
    %v2694 = vadd.f32 %v2651, %v2693
    %v2695 = vpop.f32.mrb[0].mxu0
    %v2696 = vadd.f32 %v2653, %v2695
    %v2697 = vpop.f32.mrb[0].mxu0
    %v2698 = vadd.f32 %v2655, %v2697
    %2699 = vdwg.mxu0
    %2700 = vmatprep.subr.bf16.mxu0 %v1597
    %2701 = vmatpush1.bf16.msra.mxu0 %v1596
    %2702 = vmatprep.subr.bf16.mxu0 %v1609
    %2703 = vmatpush1.bf16.msra.mxu0 %v1608
    %2704 = vmatprep.subr.bf16.mxu0 %v1621
    %2705 = vmatpush1.bf16.msra.mxu0 %v1620
    %2706 = vmatprep.subr.bf16.mxu0 %v1633
    %2707 = vmatpush1.bf16.msra.mxu0 %v1632
    %2708 = vmatprep.subr.bf16.mxu0 %v1645
    %2709 = vmatpush1.bf16.msra.mxu0 %v1644
    %2710 = vmatprep.subr.bf16.mxu0 %v1657
    %2711 = vmatpush1.bf16.msra.mxu0 %v1656
    %2712 = vmatprep.subr.bf16.mxu0 %v1669
    %2713 = vmatpush1.bf16.msra.mxu0 %v1668
    %2714 = vmatprep.subr.bf16.mxu0 %v1681
    %2715 = vmatpush1.bf16.msra.mxu0 %v1680
    %2716 = vmatprep.subr.bf16.mxu0 %v1693
    %2717 = vmatpush1.bf16.msra.mxu0 %v1692
    %2718 = vmatprep.subr.bf16.mxu0 %v1705
    %2719 = vmatpush1.bf16.msra.mxu0 %v1704
    %2720 = vmatprep.subr.bf16.mxu0 %v1717
    %2721 = vmatpush1.bf16.msra.mxu0 %v1716
    %2722 = vmatprep.subr.bf16.mxu0 %v1729
    %2723 = vmatpush1.bf16.msra.mxu0 %v1728
    %2724 = vmatprep.subr.bf16.mxu0 %v1741
    %2725 = vmatpush1.bf16.msra.mxu0 %v1740
    %2726 = vmatprep.subr.bf16.mxu0 %v1753
    %2727 = vmatpush1.bf16.msra.mxu0 %v1752
    %2728 = vmatprep.subr.bf16.mxu0 %v1765
    %2729 = vmatpush1.bf16.msra.mxu0 %v1764
    %2730 = vmatprep.subr.bf16.mxu0 %v1777
    %2731 = vmatpush1.bf16.msra.mxu0 %v1776
    %2732 = vmatprep.mubr.bf16.mxu0 %v49
    %2733 = vmatmul.mubr.bf16.gmra.mrb[0].mxu0 %v48
    %v2734 = vpop.f32.mrb[0].mxu0
    %v2735 = vadd.f32 0.0, %v2734
    %v2736 = vpop.f32.mrb[0].mxu0
    %v2737 = vadd.f32 0.0, %v2736
    %v2738 = vpop.f32.mrb[0].mxu0
    %v2739 = vadd.f32 0.0, %v2738
    %v2740 = vpop.f32.mrb[0].mxu0
    %v2741 = vadd.f32 0.0, %v2740
    %2742 = vdwg.mxu0
    %2743 = vmatprep.subr.bf16.mxu0 %v1789
    %2744 = vmatpush1.bf16.msra.mxu0 %v1788
    %2745 = vmatprep.subr.bf16.mxu0 %v1801
    %2746 = vmatpush1.bf16.msra.mxu0 %v1800
    %2747 = vmatprep.subr.bf16.mxu0 %v1813
    %2748 = vmatpush1.bf16.msra.mxu0 %v1812
    %2749 = vmatprep.subr.bf16.mxu0 %v1825
    %2750 = vmatpush1.bf16.msra.mxu0 %v1824
    %2751 = vmatprep.subr.bf16.mxu0 %v1837
    %2752 = vmatpush1.bf16.msra.mxu0 %v1836
    %2753 = vmatprep.subr.bf16.mxu0 %v1849
    %2754 = vmatpush1.bf16.msra.mxu0 %v1848
    %2755 = vmatprep.subr.bf16.mxu0 %v1861
    %2756 = vmatpush1.bf16.msra.mxu0 %v1860
    %2757 = vmatprep.subr.bf16.mxu0 %v1873
    %2758 = vmatpush1.bf16.msra.mxu0 %v1872
    %2759 = vmatprep.subr.bf16.mxu0 %v1885
    %2760 = vmatpush1.bf16.msra.mxu0 %v1884
    %2761 = vmatprep.subr.bf16.mxu0 %v1897
    %2762 = vmatpush1.bf16.msra.mxu0 %v1896
    %2763 = vmatprep.subr.bf16.mxu0 %v1909
    %2764 = vmatpush1.bf16.msra.mxu0 %v1908
    %2765 = vmatprep.subr.bf16.mxu0 %v1921
    %2766 = vmatpush1.bf16.msra.mxu0 %v1920
    %2767 = vmatprep.subr.bf16.mxu0 %v1933
    %2768 = vmatpush1.bf16.msra.mxu0 %v1932
    %2769 = vmatprep.subr.bf16.mxu0 %v1945
    %2770 = vmatpush1.bf16.msra.mxu0 %v1944
    %2771 = vmatprep.subr.bf16.mxu0 %v1957
    %2772 = vmatpush1.bf16.msra.mxu0 %v1956
    %2773 = vmatprep.subr.bf16.mxu0 %v1969
    %2774 = vmatpush1.bf16.msra.mxu0 %v1968
    %2775 = vmatprep.mubr.bf16.mxu0 %v51
    %2776 = vmatmul.mubr.bf16.gmra.mrb[0].mxu0 %v50
    %v2777 = vpop.f32.mrb[0].mxu0
    %v2778 = vadd.f32 %v2735, %v2777
    %v2779 = vpop.f32.mrb[0].mxu0
    %v2780 = vadd.f32 %v2737, %v2779
    %v2781 = vpop.f32.mrb[0].mxu0
    %v2782 = vadd.f32 %v2739, %v2781
    %v2783 = vpop.f32.mrb[0].mxu0
    %v2784 = vadd.f32 %v2741, %v2783
    %2785 = vdwg.mxu0
    %2786 = vmatprep.subr.bf16.mxu0 %v1599
    %2787 = vmatpush1.bf16.msra.mxu0 %v1598
    %2788 = vmatprep.subr.bf16.mxu0 %v1611
    %2789 = vmatpush1.bf16.msra.mxu0 %v1610
    %2790 = vmatprep.subr.bf16.mxu0 %v1623
    %2791 = vmatpush1.bf16.msra.mxu0 %v1622
    %2792 = vmatprep.subr.bf16.mxu0 %v1635
    %2793 = vmatpush1.bf16.msra.mxu0 %v1634
    %2794 = vmatprep.subr.bf16.mxu0 %v1647
    %2795 = vmatpush1.bf16.msra.mxu0 %v1646
    %2796 = vmatprep.subr.bf16.mxu0 %v1659
    %2797 = vmatpush1.bf16.msra.mxu0 %v1658
    %2798 = vmatprep.subr.bf16.mxu0 %v1671
    %2799 = vmatpush1.bf16.msra.mxu0 %v1670
    %2800 = vmatprep.subr.bf16.mxu0 %v1683
    %2801 = vmatpush1.bf16.msra.mxu0 %v1682
    %2802 = vmatprep.subr.bf16.mxu0 %v1695
    %2803 = vmatpush1.bf16.msra.mxu0 %v1694
    %2804 = vmatprep.subr.bf16.mxu0 %v1707
    %2805 = vmatpush1.bf16.msra.mxu0 %v1706
    %2806 = vmatprep.subr.bf16.mxu0 %v1719
    %2807 = vmatpush1.bf16.msra.mxu0 %v1718
    %2808 = vmatprep.subr.bf16.mxu0 %v1731
    %2809 = vmatpush1.bf16.msra.mxu0 %v1730
    %2810 = vmatprep.subr.bf16.mxu0 %v1743
    %2811 = vmatpush1.bf16.msra.mxu0 %v1742
    %2812 = vmatprep.subr.bf16.mxu0 %v1755
    %2813 = vmatpush1.bf16.msra.mxu0 %v1754
    %2814 = vmatprep.subr.bf16.mxu0 %v1767
    %2815 = vmatpush1.bf16.msra.mxu0 %v1766
    %2816 = vmatprep.subr.bf16.mxu0 %v1779
    %2817 = vmatpush1.bf16.msra.mxu0 %v1778
    %2818 = vmatprep.mubr.bf16.mxu0 %v49
    %2819 = vmatmul.mubr.bf16.gmra.mrb[0].mxu0 %v48
    %v2820 = vpop.f32.mrb[0].mxu0
    %v2821 = vadd.f32 0.0, %v2820
    %v2822 = vpop.f32.mrb[0].mxu0
    %v2823 = vadd.f32 0.0, %v2822
    %v2824 = vpop.f32.mrb[0].mxu0
    %v2825 = vadd.f32 0.0, %v2824
    %v2826 = vpop.f32.mrb[0].mxu0
    %v2827 = vadd.f32 0.0, %v2826
    %2828 = vdwg.mxu0
    %2829 = vmatprep.subr.bf16.mxu0 %v1791
    %2830 = vmatpush1.bf16.msra.mxu0 %v1790
    %2831 = vmatprep.subr.bf16.mxu0 %v1803
    %2832 = vmatpush1.bf16.msra.mxu0 %v1802
    %2833 = vmatprep.subr.bf16.mxu0 %v1815
    %2834 = vmatpush1.bf16.msra.mxu0 %v1814
    %2835 = vmatprep.subr.bf16.mxu0 %v1827
    %2836 = vmatpush1.bf16.msra.mxu0 %v1826
    %2837 = vmatprep.subr.bf16.mxu0 %v1839
    %2838 = vmatpush1.bf16.msra.mxu0 %v1838
    %2839 = vmatprep.subr.bf16.mxu0 %v1851
    %2840 = vmatpush1.bf16.msra.mxu0 %v1850
    %2841 = vmatprep.subr.bf16.mxu0 %v1863
    %2842 = vmatpush1.bf16.msra.mxu0 %v1862
    %2843 = vmatprep.subr.bf16.mxu0 %v1875
    %2844 = vmatpush1.bf16.msra.mxu0 %v1874
    %2845 = vmatprep.subr.bf16.mxu0 %v1887
    %2846 = vmatpush1.bf16.msra.mxu0 %v1886
    %2847 = vmatprep.subr.bf16.mxu0 %v1899
    %2848 = vmatpush1.bf16.msra.mxu0 %v1898
    %2849 = vmatprep.subr.bf16.mxu0 %v1911
    %2850 = vmatpush1.bf16.msra.mxu0 %v1910
    %2851 = vmatprep.subr.bf16.mxu0 %v1923
    %2852 = vmatpush1.bf16.msra.mxu0 %v1922
    %2853 = vmatprep.subr.bf16.mxu0 %v1935
    %2854 = vmatpush1.bf16.msra.mxu0 %v1934
    %2855 = vmatprep.subr.bf16.mxu0 %v1947
    %2856 = vmatpush1.bf16.msra.mxu0 %v1946
    %2857 = vmatprep.subr.bf16.mxu0 %v1959
    %2858 = vmatpush1.bf16.msra.mxu0 %v1958
    %2859 = vmatprep.subr.bf16.mxu0 %v1971
    %2860 = vmatpush1.bf16.msra.mxu0 %v1970
    %2861 = vmatprep.mubr.bf16.mxu0 %v51
    %2862 = vmatmul.mubr.bf16.gmra.mrb[0].mxu0 %v50
    %v2863 = vpop.f32.mrb[0].mxu0
    %v2864 = vadd.f32 %v2821, %v2863
    %v2865 = vpop.f32.mrb[0].mxu0
    %v2866 = vadd.f32 %v2823, %v2865
    %v2867 = vpop.f32.mrb[0].mxu0
    %v2868 = vadd.f32 %v2825, %v2867
    %v2869 = vpop.f32.mrb[0].mxu0
    %v2870 = vadd.f32 %v2827, %v2869
    %2871 = vdwg.mxu0
    %v2872 = vpack.c.bf16 %v2438, %v2434
    %v2873 = vpack.c.bf16 %v2440, %v2436
    %v2874 = vpack.c.bf16 %v2524, %v2520
    %v2875 = vpack.c.bf16 %v2526, %v2522
    %v2876 = vpack.c.bf16 %v2610, %v2606
    %v2877 = vpack.c.bf16 %v2612, %v2608
    %v2878 = vpack.c.bf16 %v2696, %v2692
    %v2879 = vpack.c.bf16 %v2698, %v2694
    %v2880 = vpack.c.bf16 %v2782, %v2778
    %v2881 = vpack.c.bf16 %v2784, %v2780
    %v2882 = vpack.c.bf16 %v2868, %v2864
    %v2883 = vpack.c.bf16 %v2870, %v2866
    %v2896 = vunpack.c.l.b16 %v2872
    %v2897 = vunpack.c.l.b16 %v2873
    %v2898 = vunpack.c.l.b16 %v2874
    %v2899 = vunpack.c.l.b16 %v2875
    %v2900 = vunpack.c.l.b16 %v2876
    %v2901 = vunpack.c.l.b16 %v2877
    %v2902 = vunpack.c.l.b16 %v2878
    %v2903 = vunpack.c.l.b16 %v2879
    %v2904 = vunpack.c.l.b16 %v2880
    %v2905 = vunpack.c.l.b16 %v2881
    %v2906 = vunpack.c.l.b16 %v2882
    %v2907 = vunpack.c.l.b16 %v2883
    %v2908 = vunpack.c.h.b16 %v2872
    %v2909 = vunpack.c.h.b16 %v2873
    %v2910 = vunpack.c.h.b16 %v2874
    %v2911 = vunpack.c.h.b16 %v2875
    %v2912 = vunpack.c.h.b16 %v2876
    %v2913 = vunpack.c.h.b16 %v2877
    %v2914 = vunpack.c.h.b16 %v2878
    %v2915 = vunpack.c.h.b16 %v2879
    %v2916 = vunpack.c.h.b16 %v2880
    %v2917 = vunpack.c.h.b16 %v2881
    %v2918 = vunpack.c.h.b16 %v2882
    %v2919 = vunpack.c.h.b16 %v2883
    %v2920 = vpack.c.b16 %v2897, %v2896
    %v2921 = vpack.c.b16 %v2899, %v2898
    %v2922 = vpack.c.b16 %v2901, %v2900
    %v2923 = vpack.c.b16 %v2903, %v2902
    %v2924 = vpack.c.b16 %v2905, %v2904
    %v2925 = vpack.c.b16 %v2907, %v2906
    %v2926 = vpack.c.b16 %v2909, %v2908
    %v2927 = vpack.c.b16 %v2911, %v2910
    %v2928 = vpack.c.b16 %v2913, %v2912
    %v2929 = vpack.c.b16 %v2915, %v2914
    %v2930 = vpack.c.b16 %v2917, %v2916
    %v2931 = vpack.c.b16 %v2919, %v2918
    %2944 = vst [vmem:[#allocation7] sm:$0xff] %v2920
    %2945 = vst [vmem:[#allocation7 + $0x8] sm:$0xff] %v2921
    %2946 = vst [vmem:[#allocation7 + $0x10] sm:$0xff] %v2922
    %2947 = vst [vmem:[#allocation7 + $0x18] sm:$0xff] %v2923
    %2948 = vst [vmem:[#allocation7 + $0x20] sm:$0xff] %v2924
    %2949 = vst [vmem:[#allocation7 + $0x28] sm:$0xff] %v2925
    %2950 = vst [vmem:[#allocation7 + $0x30] sm:$0xff] %v2926
    %2951 = vst [vmem:[#allocation7 + $0x38] sm:$0xff] %v2927
    %2952 = vst [vmem:[#allocation7 + $0x40] sm:$0xff] %v2928
    %2953 = vst [vmem:[#allocation7 + $0x48] sm:$0xff] %v2929
    %2954 = vst [vmem:[#allocation7 + $0x50] sm:$0xff] %v2930
    %2955 = vst [vmem:[#allocation7 + $0x58] sm:$0xff] %v2931
    // Predicated region
    $region18: #{tpu_custom_call.1} parent=1 // pred_check
      _
    $region19: #{tpu_custom_call.1} parent=1 // pred_check_branch
      %2957 = sbr.rel (0) target = $region21
    $region20: #{tpu_custom_call.1} parent=1 // pred_region
      %s2959 = ssub.s32 1536, 1536
      %2960 = vsyncadd [#allocation4], %s2959
      %s2961 = sshll.u32 [#allocation7], 4
      %s2962 = int_to_ptr.vmem [resolvable:$true] %s2961
      %2967 = dma.vmem_to_hbm [thread:$0]  %s2962, 1536, %s2, [#allocation4], 768, 768, 48
    $region21: #{tpu_custom_call.1} parent=1 // pred_fallthru
      _
    // Predicated region
    $region22: #{tpu_custom_call.1} parent=1 // pred_check
      _
    $region23: #{tpu_custom_call.1} parent=1 // pred_check_branch
      %2969 = sbr.rel (0) target = $region25
    $region24: #{tpu_custom_call.1} parent=1 // pred_region
      %2970 = dma.done [#allocation4], 1536
    $region25: #{tpu_custom_call.1} parent=1 // pred_fallthru
      _
    %2971 = vsyncpa [#allocation3], 1
    %2972 = vsyncpa [#allocation6], 1
    %2973 = vsyncpa [#allocation4], 1

</llo_original>
